<compile_context>
chip_gen: v7x
topology: tpu7x:2x2x1
jax: 0.10.0
libtpu: 0.0.40
codegen_flags: <defaults>
</compile_context>

<pallas_src>
import jax
import jax.numpy as jnp
from jax import lax
from jax.experimental import pallas as pl
from jax.experimental.pallas import tpu as pltpu

BN_EPS = 1e-5


# ----------------------------- Pallas kernels ------------------------------ #

def _moments_kernel(p_ref, i_ref, d_ref, gp_ref, gi_ref, sp_ref, si_ref):
    """Per-tile moments of the two conv inputs.

    p/i/d refs: (Cin, t) with t lane-dense.  Outputs: Cin x Cin Gram and
    per-channel sums for xp = (1-e)*i + p and xi = i + e*p.
    """
    p = p_ref[...]
    i = i_ref[...]
    d = d_ref[...]
    # exp may overflow to inf for very negative d; 1/(1+inf) saturates to the
    # correct 0 limit, so this matches sigmoid numerically where it matters.
    e = 1.0 / (1.0 + jnp.exp(-d))
    xp = (1.0 - e) * i + p
    xi = i + e * p
    # A @ A^T with the contraction over the lane (spatial) axis -> (Cin, Cin).
    dn = (((1,), (1,)), ((), ()))
    gp_ref[...] = lax.dot_general(xp, xp, dn, preferred_element_type=jnp.float32)
    gi_ref[...] = lax.dot_general(xi, xi, dn, preferred_element_type=jnp.float32)
    sp_ref[...] = jnp.sum(xp, axis=-1, keepdims=True)
    si_ref[...] = jnp.sum(xi, axis=-1, keepdims=True)


def _apply_kernel(p_ref, i_ref, d_ref, wps_ref, wis_ref, b_ref, o_ref):
    """Fused gate + mixes + both 1x1 convs (BN scale folded into the weights)
    + BN bias + final add, one lane-dense store of (Cout, t)."""
    p = p_ref[...]
    i = i_ref[...]
    d = d_ref[...]
    e = 1.0 / (1.0 + jnp.exp(-d))
    xp = (1.0 - e) * i + p
    xi = i + e * p
    y = jnp.dot(wps_ref[...], xp, preferred_element_type=jnp.float32)
    y = y + jnp.dot(wis_ref[...], xi, preferred_element_type=jnp.float32)
    o_ref[...] = (y + b_ref[...]).astype(o_ref.dtype)


# ------------------------------- wrappers ----------------------------------- #

def _round_up(x, m):
    return ((x + m - 1) // m) * m


def _choose_spatial_tile(hw, cin, cout, vmem_budget=16 * 1024 * 1024):
    """Largest lane-dense spatial tile whose VMEM footprint (double-buffered
    inputs/output + f32 temporaries, counting sublane padding of the channel
    axis to a multiple of 8) stays under a budget that is safe on v5e/v6e/v7x
    together with the explicit vmem_limit_bytes below."""
    cin_p = _round_up(cin, 8)
    cout_p = _round_up(cout, 8)
    # bytes of VMEM per spatial lane: 3 double-buffered inputs + 1 double-
    # buffered output + ~single-buffered temporaries (xp, xi, y).
    per_lane = 4 * (2 * (3 * cin_p + cout_p) + (2 * cin_p + cout_p))
    cap = max(128, (vmem_budget // per_lane) // 128 * 128)
    if hw % 128 != 0:
        # TODO(synk): ragged spatial extents fall back to one full row per grid
        # step (block dim == array dim is always legal); add in-kernel lane
        # masking to tile those too.
        return hw
    t = min(hw, cap)
    while hw % t != 0:
        t -= 128
    return t


def light_bag_forward(params, p, i, d):
    N, Cin, H, W = p.shape
    Cout = params["wp"].shape[1]
    HW = H * W
    M = N * HW

    # NCHW -> (N, C, H*W): a free view reshape, no transpose / extra HBM pass.
    p3 = p.reshape(N, Cin, HW)
    i3 = i.reshape(N, Cin, HW)
    d3 = d.reshape(N, Cin, HW)

    t = _choose_spatial_tile(HW, Cin, Cout)
    nt = HW // t
    grid = (N, nt)
    cparams = pltpu.CompilerParams(
        dimension_semantics=("parallel", "parallel"),
        # Explicit scoped-VMEM limit: above v5e's 16 MiB default, within v7x's
        # 64 MiB physical, matches the 16 MiB footprint budget used above.
        vmem_limit_bytes=32 * 1024 * 1024,
    )

    in_spec = pl.BlockSpec((None, Cin, t), lambda n, s: (n, 0, s))

    # ---- kernel A: per-tile moments of the conv inputs (tiny outputs) ----
    gp, gi, sp, si = pl.pallas_call(
        _moments_kernel,
        out_shape=(
            jax.ShapeDtypeStruct((N, nt, Cin, Cin), jnp.float32),
            jax.ShapeDtypeStruct((N, nt, Cin, Cin), jnp.float32),
            jax.ShapeDtypeStruct((N, nt, Cin, 1), jnp.float32),
            jax.ShapeDtypeStruct((N, nt, Cin, 1), jnp.float32),
        ),
        grid=grid,
        in_specs=[in_spec, in_spec, in_spec],
        out_specs=(
            pl.BlockSpec((None, None, Cin, Cin), lambda n, s: (n, s, 0, 0)),
            pl.BlockSpec((None, None, Cin, Cin), lambda n, s: (n, s, 0, 0)),
            pl.BlockSpec((None, None, Cin, 1), lambda n, s: (n, s, 0, 0)),
            pl.BlockSpec((None, None, Cin, 1), lambda n, s: (n, s, 0, 0)),
        ),
        compiler_params=cparams,
    )(p3, i3, d3)

    # ---- tiny JAX glue: fold moments through W and gamma/beta into the
    #      train-mode BN (biased variance) scale/bias; fold scale into W ----
    Gp = jnp.sum(gp, axis=(0, 1))                 # (Cin, Cin)
    Gi = jnp.sum(gi, axis=(0, 1))
    Sp = jnp.sum(sp, axis=(0, 1))[:, 0]           # (Cin,)
    Si = jnp.sum(si, axis=(0, 1))[:, 0]
    inv_m = 1.0 / M

    def fold(w, G, S, gamma, beta):
        mean = (S @ w) * inv_m                                    # (Cout,)
        ex2 = jnp.einsum("co,cd,do->o", w, G, w) * inv_m          # E[y^2]
        var = ex2 - mean * mean                                   # biased var
        scale = gamma * lax.rsqrt(var + BN_EPS)
        bias = beta - mean * scale
        w_scaled_t = jnp.transpose(w * scale[None, :])            # (Cout, Cin)
        return w_scaled_t, bias

    wps_t, bias_p = fold(params["wp"], Gp, Sp, params["gamma_p"], params["beta_p"])
    wis_t, bias_i = fold(params["wi"], Gi, Si, params["gamma_i"], params["beta_i"])
    bias_col = (bias_p + bias_i).reshape(Cout, 1)

    # ---- kernel B: recompute gate/mix, dual conv + fused BN affine + add ----
    out3 = pl.pallas_call(
        _apply_kernel,
        out_shape=jax.ShapeDtypeStruct((N, Cout, HW), jnp.float32),
        grid=grid,
        in_specs=[
            in_spec, in_spec, in_spec,
            pl.BlockSpec((Cout, Cin), lambda n, s: (0, 0)),
            pl.BlockSpec((Cout, Cin), lambda n, s: (0, 0)),
            pl.BlockSpec((Cout, 1), lambda n, s: (0, 0)),
        ],
        out_specs=pl.BlockSpec((None, Cout, t), lambda n, s: (n, 0, s)),
        compiler_params=cparams,
    )(p3, i3, d3, wps_t, wis_t, bias_col)

    # (N, Cout, H*W) -> NCHW: free reshape, no transpose.
    return out3.reshape(N, Cout, H, W)


# Pure-JAX reference (correctness sanity check in __main__).
def _reference_forward(params, p, i, d):
    e = jax.nn.sigmoid(d)

    def conv1x1(x, w):  # w is (Cin, Cout) == torch (Cout, Cin, 1, 1) transposed
        return jnp.einsum("nchw,co->nohw", x, w)

    def bn(x, gamma, beta):
        m = jnp.mean(x, axis=(0, 2, 3), keepdims=True)
        v = jnp.var(x, axis=(0, 2, 3), keepdims=True)
        return ((x - m) / jnp.sqrt(v + BN_EPS)) * gamma[None, :, None, None] \
            + beta[None, :, None, None]

    yp = bn(conv1x1((1.0 - e) * i + p, params["wp"]),
            params["gamma_p"], params["beta_p"])
    yi = bn(conv1x1(i + e * p, params["wi"]),
            params["gamma_i"], params["beta_i"])
    return yp + yi


def init_params(key, in_channels, out_channels):
    kp, ki = jax.random.split(key)
    std = 1.0 / (in_channels ** 0.5)
    return dict(
        # Conv2d 1x1 weights stored as (Cin, Cout).
        wp=std * jax.random.normal(kp, (in_channels, out_channels), jnp.float32),
        wi=std * jax.random.normal(ki, (in_channels, out_channels), jnp.float32),
        # BatchNorm2d defaults: gamma = 1, beta = 0.
        gamma_p=jnp.ones((out_channels,), jnp.float32),
        beta_p=jnp.zeros((out_channels,), jnp.float32),
        gamma_i=jnp.ones((out_channels,), jnp.float32),
        beta_i=jnp.zeros((out_channels,), jnp.float32),
    )


if __name__ == "__main__":
    in_channels, out_channels = 4, 16
    N, H, W = 2, 16, 16

    key = jax.random.PRNGKey(0)
    kP, kI, kD, kW = jax.random.split(key, 4)
    p = jax.random.normal(kP, (N, in_channels, H, W), jnp.float32)
    i = jax.random.normal(kI, (N, in_channels, H, W), jnp.float32)
    d = jax.random.normal(kD, (N, in_channels, H, W), jnp.float32)
    params = init_params(kW, in_channels, out_channels)

    fwd = jax.jit(light_bag_forward)
    out = fwd(params, p, i, d)
    jax.block_until_ready(out)

    assert out.shape == (N, out_channels, H, W), out.shape
    assert bool(jnp.all(jnp.isfinite(out)))

    ref = _reference_forward(params, p, i, d)
    assert bool(jnp.allclose(out, ref, atol=2e-3, rtol=2e-3)), \
        float(jnp.max(jnp.abs(out - ref)))

    print("KERNEL_OK")
</pallas_src>

<mosaic_0001>
module attributes {stable_mosaic.version = 11 : i64} {
  func.func @_moments_kernel(%arg0: i32, %arg1: i32, %arg2: memref<1x4x256xf32, #tpu.memory_space<vmem>>, %arg3: memref<1x4x256xf32, #tpu.memory_space<vmem>>, %arg4: memref<1x4x256xf32, #tpu.memory_space<vmem>>, %arg5: memref<1x1x4x4xf32, #tpu.memory_space<vmem>>, %arg6: memref<1x1x4x4xf32, #tpu.memory_space<vmem>>, %arg7: memref<1x1x4x1xf32, #tpu.memory_space<vmem>>, %arg8: memref<1x1x4x1xf32, #tpu.memory_space<vmem>>) attributes {dimension_semantics = [#tpu.dimension_semantics<parallel>, #tpu.dimension_semantics<parallel>], iteration_bounds = array<i64: 2, 1>, scalar_prefetch = 0 : i64, scratch_operands = 0 : i64, tpu.core_type = #tpu.core_type<tc>, window_params = [{transform_indices = @transform_0, window_bounds = array<i64: 1, 4, 256>}, {transform_indices = @transform_1, window_bounds = array<i64: 1, 4, 256>}, {transform_indices = @transform_2, window_bounds = array<i64: 1, 4, 256>}, {transform_indices = @transform_3, window_bounds = array<i64: 1, 1, 4, 4>}, {transform_indices = @transform_4, window_bounds = array<i64: 1, 1, 4, 4>}, {transform_indices = @transform_5, window_bounds = array<i64: 1, 1, 4, 1>}, {transform_indices = @transform_6, window_bounds = array<i64: 1, 1, 4, 1>}]} {
    %c0 = arith.constant 0 : index
    %c0_0 = arith.constant 0 : index
    %c0_1 = arith.constant 0 : index
    %0 = vector.load %arg2[%c0, %c0_0, %c0_1] : memref<1x4x256xf32, #tpu.memory_space<vmem>>, vector<1x4x256xf32>
    %1 = vector.shape_cast %0 : vector<1x4x256xf32> to vector<4x256xf32>
    %c0_2 = arith.constant 0 : index
    %c0_3 = arith.constant 0 : index
    %c0_4 = arith.constant 0 : index
    %2 = vector.load %arg3[%c0_2, %c0_3, %c0_4] : memref<1x4x256xf32, #tpu.memory_space<vmem>>, vector<1x4x256xf32>
    %3 = vector.shape_cast %2 : vector<1x4x256xf32> to vector<4x256xf32>
    %c0_5 = arith.constant 0 : index
    %c0_6 = arith.constant 0 : index
    %c0_7 = arith.constant 0 : index
    %4 = vector.load %arg4[%c0_5, %c0_6, %c0_7] : memref<1x4x256xf32, #tpu.memory_space<vmem>>, vector<1x4x256xf32>
    %5 = vector.shape_cast %4 : vector<1x4x256xf32> to vector<4x256xf32>
    %cst = arith.constant 0.000000e+00 : f32
    %6 = vector.broadcast %cst : f32 to vector<4x256xf32>
    %7 = arith.subf %6, %5 : vector<4x256xf32>
    %8 = math.exp %7 : vector<4x256xf32>
    %cst_8 = arith.constant 1.000000e+00 : f32
    %9 = vector.broadcast %cst_8 : f32 to vector<4x256xf32>
    %10 = arith.addf %9, %8 : vector<4x256xf32>
    %cst_9 = arith.constant 1.000000e+00 : f32
    %11 = vector.broadcast %cst_9 : f32 to vector<4x256xf32>
    %12 = arith.divf %11, %10 : vector<4x256xf32>
    %cst_10 = arith.constant 1.000000e+00 : f32
    %13 = vector.broadcast %cst_10 : f32 to vector<4x256xf32>
    %14 = arith.subf %13, %12 : vector<4x256xf32>
    %15 = arith.mulf %14, %3 : vector<4x256xf32>
    %16 = arith.addf %15, %1 : vector<4x256xf32>
    %17 = arith.mulf %12, %1 : vector<4x256xf32>
    %18 = arith.addf %3, %17 : vector<4x256xf32>
    %cst_11 = arith.constant dense<0.000000e+00> : vector<4x4xf32>
    %19 = tpu.matmul %16, %16, %cst_11 {dimension_numbers = #tpu.dot_dimension_numbers<[1], [1], [0], [0], [0, 0, 1, 0], [], []>} : vector<4x256xf32>, vector<4x256xf32>, vector<4x4xf32> -> vector<4x4xf32>
    %c0_12 = arith.constant 0 : index
    %c0_13 = arith.constant 0 : index
    %c0_14 = arith.constant 0 : index
    %c0_15 = arith.constant 0 : index
    %20 = vector.load %arg5[%c0_12, %c0_13, %c0_14, %c0_15] : memref<1x1x4x4xf32, #tpu.memory_space<vmem>>, vector<1x1x4x4xf32>
    %21 = vector.shape_cast %20 : vector<1x1x4x4xf32> to vector<4x4xf32>
    %22 = vector.shape_cast %19 : vector<4x4xf32> to vector<1x1x4x4xf32>
    tpu.vector_store %arg5[%c0_12, %c0_13, %c0_14, %c0_15], %22 {strides = array<i32>} : memref<1x1x4x4xf32, #tpu.memory_space<vmem>>, vector<1x1x4x4xf32>,
    %cst_16 = arith.constant dense<0.000000e+00> : vector<4x4xf32>
    %23 = tpu.matmul %18, %18, %cst_16 {dimension_numbers = #tpu.dot_dimension_numbers<[1], [1], [0], [0], [0, 0, 1, 0], [], []>} : vector<4x256xf32>, vector<4x256xf32>, vector<4x4xf32> -> vector<4x4xf32>
    %c0_17 = arith.constant 0 : index
    %c0_18 = arith.constant 0 : index
    %c0_19 = arith.constant 0 : index
    %c0_20 = arith.constant 0 : index
    %24 = vector.load %arg6[%c0_17, %c0_18, %c0_19, %c0_20] : memref<1x1x4x4xf32, #tpu.memory_space<vmem>>, vector<1x1x4x4xf32>
    %25 = vector.shape_cast %24 : vector<1x1x4x4xf32> to vector<4x4xf32>
    %26 = vector.shape_cast %23 : vector<4x4xf32> to vector<1x1x4x4xf32>
    tpu.vector_store %arg6[%c0_17, %c0_18, %c0_19, %c0_20], %26 {strides = array<i32>} : memref<1x1x4x4xf32, #tpu.memory_space<vmem>>, vector<1x1x4x4xf32>,
    %cst_21 = arith.constant dense<0.000000e+00> : vector<4xf32>
    %27 = vector.multi_reduction <add>, %16, %cst_21 [1] : vector<4x256xf32> to vector<4xf32>
    %28 = vector.shape_cast %27 : vector<4xf32> to vector<4x1xf32>
    %c0_22 = arith.constant 0 : index
    %c0_23 = arith.constant 0 : index
    %c0_24 = arith.constant 0 : index
    %c0_25 = arith.constant 0 : index
    %29 = vector.load %arg7[%c0_22, %c0_23, %c0_24, %c0_25] : memref<1x1x4x1xf32, #tpu.memory_space<vmem>>, vector<1x1x4x1xf32>
    %30 = vector.shape_cast %29 : vector<1x1x4x1xf32> to vector<4x1xf32>
    %31 = vector.shape_cast %28 : vector<4x1xf32> to vector<1x1x4x1xf32>
    tpu.vector_store %arg7[%c0_22, %c0_23, %c0_24, %c0_25], %31 {strides = array<i32>} : memref<1x1x4x1xf32, #tpu.memory_space<vmem>>, vector<1x1x4x1xf32>,
    %cst_26 = arith.constant dense<0.000000e+00> : vector<4xf32>
    %32 = vector.multi_reduction <add>, %18, %cst_26 [1] : vector<4x256xf32> to vector<4xf32>
    %33 = vector.shape_cast %32 : vector<4xf32> to vector<4x1xf32>
    %c0_27 = arith.constant 0 : index
    %c0_28 = arith.constant 0 : index
    %c0_29 = arith.constant 0 : index
    %c0_30 = arith.constant 0 : index
    %34 = vector.load %arg8[%c0_27, %c0_28, %c0_29, %c0_30] : memref<1x1x4x1xf32, #tpu.memory_space<vmem>>, vector<1x1x4x1xf32>
    %35 = vector.shape_cast %34 : vector<1x1x4x1xf32> to vector<4x1xf32>
    %36 = vector.shape_cast %33 : vector<4x1xf32> to vector<1x1x4x1xf32>
    tpu.vector_store %arg8[%c0_27, %c0_28, %c0_29, %c0_30], %36 {strides = array<i32>} : memref<1x1x4x1xf32, #tpu.memory_space<vmem>>, vector<1x1x4x1xf32>,
    return
  }
  func.func @transform_0(%arg0: i32, %arg1: i32) -> (i32, i32, i32) {
    %c0_i32 = arith.constant 0 : i32
    %c0_i32_0 = arith.constant 0 : i32
    return %arg0, %c0_i32, %arg1 : i32, i32, i32
  }
  func.func @transform_1(%arg0: i32, %arg1: i32) -> (i32, i32, i32) {
    %c0_i32 = arith.constant 0 : i32
    %c0_i32_0 = arith.constant 0 : i32
    return %arg0, %c0_i32, %arg1 : i32, i32, i32
  }
  func.func @transform_2(%arg0: i32, %arg1: i32) -> (i32, i32, i32) {
    %c0_i32 = arith.constant 0 : i32
    %c0_i32_0 = arith.constant 0 : i32
    return %arg0, %c0_i32, %arg1 : i32, i32, i32
  }
  func.func @transform_3(%arg0: i32, %arg1: i32) -> (i32, i32, i32, i32) {
    %c0_i32 = arith.constant 0 : i32
    %c0_i32_0 = arith.constant 0 : i32
    %c0_i32_1 = arith.constant 0 : i32
    return %arg0, %arg1, %c0_i32, %c0_i32_0 : i32, i32, i32, i32
  }
  func.func @transform_4(%arg0: i32, %arg1: i32) -> (i32, i32, i32, i32) {
    %c0_i32 = arith.constant 0 : i32
    %c0_i32_0 = arith.constant 0 : i32
    %c0_i32_1 = arith.constant 0 : i32
    return %arg0, %arg1, %c0_i32, %c0_i32_0 : i32, i32, i32, i32
  }
  func.func @transform_5(%arg0: i32, %arg1: i32) -> (i32, i32, i32, i32) {
    %c0_i32 = arith.constant 0 : i32
    %c0_i32_0 = arith.constant 0 : i32
    %c0_i32_1 = arith.constant 0 : i32
    return %arg0, %arg1, %c0_i32, %c0_i32_0 : i32, i32, i32, i32
  }
  func.func @transform_6(%arg0: i32, %arg1: i32) -> (i32, i32, i32, i32) {
    %c0_i32 = arith.constant 0 : i32
    %c0_i32_0 = arith.constant 0 : i32
    %c0_i32_1 = arith.constant 0 : i32
    return %arg0, %arg1, %c0_i32, %c0_i32_0 : i32, i32, i32, i32
  }
}

module attributes {stable_mosaic.version = 11 : i64} {
  func.func @_apply_kernel(%arg0: i32, %arg1: i32, %arg2: memref<1x4x256xf32, #tpu.memory_space<vmem>>, %arg3: memref<1x4x256xf32, #tpu.memory_space<vmem>>, %arg4: memref<1x4x256xf32, #tpu.memory_space<vmem>>, %arg5: memref<16x4xf32, #tpu.memory_space<vmem>>, %arg6: memref<16x4xf32, #tpu.memory_space<vmem>>, %arg7: memref<16x1xf32, #tpu.memory_space<vmem>>, %arg8: memref<1x16x256xf32, #tpu.memory_space<vmem>>) attributes {dimension_semantics = [#tpu.dimension_semantics<parallel>, #tpu.dimension_semantics<parallel>], iteration_bounds = array<i64: 2, 1>, scalar_prefetch = 0 : i64, scratch_operands = 0 : i64, tpu.core_type = #tpu.core_type<tc>, window_params = [{transform_indices = @transform_0, window_bounds = array<i64: 1, 4, 256>}, {transform_indices = @transform_1, window_bounds = array<i64: 1, 4, 256>}, {transform_indices = @transform_2, window_bounds = array<i64: 1, 4, 256>}, {pipeline_mode = #tpu.pipeline_mode<synchronous>, transform_indices = @transform_3, window_bounds = array<i64: 16, 4>}, {pipeline_mode = #tpu.pipeline_mode<synchronous>, transform_indices = @transform_4, window_bounds = array<i64: 16, 4>}, {pipeline_mode = #tpu.pipeline_mode<synchronous>, transform_indices = @transform_5, window_bounds = array<i64: 16, 1>}, {transform_indices = @transform_6, window_bounds = array<i64: 1, 16, 256>}]} {
    %c0 = arith.constant 0 : index
    %c0_0 = arith.constant 0 : index
    %c0_1 = arith.constant 0 : index
    %0 = vector.load %arg2[%c0, %c0_0, %c0_1] : memref<1x4x256xf32, #tpu.memory_space<vmem>>, vector<1x4x256xf32>
    %1 = vector.shape_cast %0 : vector<1x4x256xf32> to vector<4x256xf32>
    %c0_2 = arith.constant 0 : index
    %c0_3 = arith.constant 0 : index
    %c0_4 = arith.constant 0 : index
    %2 = vector.load %arg3[%c0_2, %c0_3, %c0_4] : memref<1x4x256xf32, #tpu.memory_space<vmem>>, vector<1x4x256xf32>
    %3 = vector.shape_cast %2 : vector<1x4x256xf32> to vector<4x256xf32>
    %c0_5 = arith.constant 0 : index
    %c0_6 = arith.constant 0 : index
    %c0_7 = arith.constant 0 : index
    %4 = vector.load %arg4[%c0_5, %c0_6, %c0_7] : memref<1x4x256xf32, #tpu.memory_space<vmem>>, vector<1x4x256xf32>
    %5 = vector.shape_cast %4 : vector<1x4x256xf32> to vector<4x256xf32>
    %cst = arith.constant 0.000000e+00 : f32
    %6 = vector.broadcast %cst : f32 to vector<4x256xf32>
    %7 = arith.subf %6, %5 : vector<4x256xf32>
    %8 = math.exp %7 : vector<4x256xf32>
    %cst_8 = arith.constant 1.000000e+00 : f32
    %9 = vector.broadcast %cst_8 : f32 to vector<4x256xf32>
    %10 = arith.addf %9, %8 : vector<4x256xf32>
    %cst_9 = arith.constant 1.000000e+00 : f32
    %11 = vector.broadcast %cst_9 : f32 to vector<4x256xf32>
    %12 = arith.divf %11, %10 : vector<4x256xf32>
    %cst_10 = arith.constant 1.000000e+00 : f32
    %13 = vector.broadcast %cst_10 : f32 to vector<4x256xf32>
    %14 = arith.subf %13, %12 : vector<4x256xf32>
    %15 = arith.mulf %14, %3 : vector<4x256xf32>
    %16 = arith.addf %15, %1 : vector<4x256xf32>
    %17 = arith.mulf %12, %1 : vector<4x256xf32>
    %18 = arith.addf %3, %17 : vector<4x256xf32>
    %c0_11 = arith.constant 0 : index
    %c0_12 = arith.constant 0 : index
    %19 = vector.load %arg5[%c0_11, %c0_12] : memref<16x4xf32, #tpu.memory_space<vmem>>, vector<16x4xf32>
    %cst_13 = arith.constant dense<0.000000e+00> : vector<16x256xf32>
    %20 = tpu.matmul %19, %16, %cst_13 {dimension_numbers = #tpu.dot_dimension_numbers<[1], [0], [0], [1], [0, 0, 1, 1], [], []>} : vector<16x4xf32>, vector<4x256xf32>, vector<16x256xf32> -> vector<16x256xf32>
    %c0_14 = arith.constant 0 : index
    %c0_15 = arith.constant 0 : index
    %21 = vector.load %arg6[%c0_14, %c0_15] : memref<16x4xf32, #tpu.memory_space<vmem>>, vector<16x4xf32>
    %cst_16 = arith.constant dense<0.000000e+00> : vector<16x256xf32>
    %22 = tpu.matmul %21, %18, %cst_16 {dimension_numbers = #tpu.dot_dimension_numbers<[1], [0], [0], [1], [0, 0, 1, 1], [], []>} : vector<16x4xf32>, vector<4x256xf32>, vector<16x256xf32> -> vector<16x256xf32>
    %23 = arith.addf %20, %22 : vector<16x256xf32>
    %c0_17 = arith.constant 0 : index
    %c0_18 = arith.constant 0 : index
    %24 = vector.load %arg7[%c0_17, %c0_18] : memref<16x1xf32, #tpu.memory_space<vmem>>, vector<16x1xf32>
    %25 = vector.broadcast %24 : vector<16x1xf32> to vector<16x256xf32>
    %26 = arith.addf %23, %25 : vector<16x256xf32>
    %c0_19 = arith.constant 0 : index
    %c0_20 = arith.constant 0 : index
    %c0_21 = arith.constant 0 : index
    %27 = vector.load %arg8[%c0_19, %c0_20, %c0_21] : memref<1x16x256xf32, #tpu.memory_space<vmem>>, vector<1x16x256xf32>
    %28 = vector.shape_cast %27 : vector<1x16x256xf32> to vector<16x256xf32>
    %29 = vector.shape_cast %26 : vector<16x256xf32> to vector<1x16x256xf32>
    tpu.vector_store %arg8[%c0_19, %c0_20, %c0_21], %29 {strides = array<i32>} : memref<1x16x256xf32, #tpu.memory_space<vmem>>, vector<1x16x256xf32>,
    return
  }
  func.func @transform_0(%arg0: i32, %arg1: i32) -> (i32, i32, i32) {
    %c0_i32 = arith.constant 0 : i32
    %c0_i32_0 = arith.constant 0 : i32
    return %arg0, %c0_i32, %arg1 : i32, i32, i32
  }
  func.func @transform_1(%arg0: i32, %arg1: i32) -> (i32, i32, i32) {
    %c0_i32 = arith.constant 0 : i32
    %c0_i32_0 = arith.constant 0 : i32
    return %arg0, %c0_i32, %arg1 : i32, i32, i32
  }
  func.func @transform_2(%arg0: i32, %arg1: i32) -> (i32, i32, i32) {
    %c0_i32 = arith.constant 0 : i32
    %c0_i32_0 = arith.constant 0 : i32
    return %arg0, %c0_i32, %arg1 : i32, i32, i32
  }
  func.func @transform_3(%arg0: i32, %arg1: i32) -> (i32, i32) {
    %c0_i32 = arith.constant 0 : i32
    %c0_i32_0 = arith.constant 0 : i32
    %c0_i32_1 = arith.constant 0 : i32
    return %c0_i32, %c0_i32_0 : i32, i32
  }
  func.func @transform_4(%arg0: i32, %arg1: i32) -> (i32, i32) {
    %c0_i32 = arith.constant 0 : i32
    %c0_i32_0 = arith.constant 0 : i32
    %c0_i32_1 = arith.constant 0 : i32
    return %c0_i32, %c0_i32_0 : i32, i32
  }
  func.func @transform_5(%arg0: i32, %arg1: i32) -> (i32, i32) {
    %c0_i32 = arith.constant 0 : i32
    %c0_i32_0 = arith.constant 0 : i32
    %c0_i32_1 = arith.constant 0 : i32
    return %c0_i32, %c0_i32_0 : i32, i32
  }
  func.func @transform_6(%arg0: i32, %arg1: i32) -> (i32, i32, i32) {
    %c0_i32 = arith.constant 0 : i32
    %c0_i32_0 = arith.constant 0 : i32
    return %arg0, %c0_i32, %arg1 : i32, i32, i32
  }
}

</mosaic_0001>

<llo_original>
// kernel: light_bag_forward.2
$region0: #{light_bag_forward.2}
  #allocation0 [shape = 'u32[]', space=smem, size = 0x4, offset = 0x4, fixed_abs, tag = 'smem constant byte address 0x4 - core index']
  #allocation1 [shape = 'u32[144,128]{1,0:T(1,128)}', space=vmem, size = 0x12000, scoped, tag = 'internal scratch']
  %s0 = inlined_call_operand.vmem [shape: f32[2,4,256], index: 0, kind: input, shape index: {}]
  %s1 = inlined_call_operand.vmem [shape: f32[2,4,256], index: 1, kind: input, shape index: {}]
  %s2 = inlined_call_operand.vmem [shape: f32[2,4,256], index: 2, kind: input, shape index: {}]
  %s3 = inlined_call_operand.vmem [shape: f32[2,1,4,4], index: 3, kind: output, shape index: {0}]
  %s4 = inlined_call_operand.vmem [shape: f32[2,1,4,4], index: 4, kind: output, shape index: {1}]
  %s5 = inlined_call_operand.vmem [shape: f32[2,1,4,1], index: 5, kind: output, shape index: {2}]
  %s6 = inlined_call_operand.vmem [shape: f32[2,1,4,1], index: 6, kind: output, shape index: {3}]
  %7 = xla_tuple %s3, %s4, %s5, %s6
  %s8 = sld [smem:[#allocation0]]
  $region69: #{light_bag_forward.2} parent=0
    _
  %s10 = ssub.s32 1, %s8
  %s11 = scalar_select 0, %s10, %s8
  loop: start=0, step=1, limit=4
  $region2: #{light_bag_forward.2} parent=0 // loop_pre_header
    _
  $region3: #{light_bag_forward.2} parent=0 // loop_header
    %s13 = sphi 0, %s17
    %p14 = scmp.ge.s32.totalorder %s13, 4
    %s20 = sphi 0, %s32
    %s21 = sphi 0, %s28
    %s22 = sphi 0, %s20
    %s23 = sphi 0, %s21
    %s24 = sphi 0, %s22
    %s25 = sphi 0, %s23
    %s37 = sphi 0, %s39
    %s40 = sphi 0, %s37
    %s41 = sphi 0, %s40
    %s57 = sphi 0, %s41
    %s65 = sphi 0, %s67
    %s68 = sphi 0, %s65
    %s69 = sphi 0, %s68
    %s85 = sphi 0, %s69
    %s93 = sphi 0, %s95
    %s96 = sphi 0, %s93
    %s97 = sphi 0, %s96
    %s113 = sphi 0, %s97
    %s121 = sphi 0, %s123
    %s124 = sphi 0, %s121
    %s125 = sphi 0, %s124
    %s141 = sphi 0, %s125
    %s149 = sphi 0, %s151
    %s152 = sphi 0, %s149
    %s153 = sphi 0, %s152
    %s169 = sphi 0, %s153
    %s177 = sphi 0, %s179
    %s180 = sphi 0, %s177
    %s181 = sphi 0, %s180
    %s197 = sphi 0, %s181
    %s205 = sphi 0, %s207
    %s208 = sphi 0, %s205
    %s209 = sphi 0, %s208
    %s225 = sphi 0, %s209
  $region4: #{light_bag_forward.2} parent=0 // loop_header_branch
    %16 = sbr.rel (%p14) target = $region8
  $region5: #{light_bag_forward.2} parent=0 // loop_body
    %s18 = ssub.s32 %s13, 1
    %s19 = ssub.s32 %s13, 2
    %s26 = sadd.s32 1, %s21
    %p27 = scmp.ge.s32.totalorder %s26, 1
    %s28 = scalar_select %p27, 0, %s26
    %s29 = sadd.s32 1, %s20
    %s30 = scalar_select %p27, %s29, %s20
    %p31 = scmp.ge.s32.totalorder %s30, 2
    %s32 = scalar_select %p31, 0, %s30
    %s33 = ssub.s32 %s20, %s32
    %s34 = ssub.s32 %s21, %s28
    %s35 = sor.u32 %s33, %s34
    %p36 = scmp.eq.s32.totalorder %s35, 0
    %s38 = sadd.s32 %s37, 1
    %s39 = scalar_select %p36, %s37, %s38
    %p42 = pneg %p36
    %p43 = scmp.eq.s32.totalorder %s13, 1
    %p44 = por %p42, %p43
    %p45 = scmp.ne.s32.totalorder %s37, %s40
    %p46 = scmp.eq.s32.totalorder %s13, 0
    %p47 = por %p45, %p46
    %p48 = scmp.ne.s32.totalorder %s37, %s40
    %p49 = scmp.eq.s32.totalorder %s18, 1
    %p50 = por %p48, %p49
    %p51 = scmp.ne.s32.totalorder %s40, %s41
    %p52 = scmp.eq.s32.totalorder %s18, 0
    %p53 = por %p51, %p52
    %p54 = scmp.ne.s32.totalorder %s40, %s41
    %p55 = scmp.eq.s32.totalorder %s19, 1
    %p56 = por %p54, %p55
    %p58 = scmp.ne.s32.totalorder %s41, %s57
    %p59 = scmp.eq.s32.totalorder %s19, 0
    %p60 = por %p58, %p59
    %s61 = ssub.s32 %s20, %s32
    %s62 = ssub.s32 %s21, %s28
    %s63 = sor.u32 %s61, %s62
    %p64 = scmp.eq.s32.totalorder %s63, 0
    %s66 = sadd.s32 %s65, 1
    %s67 = scalar_select %p64, %s65, %s66
    %p70 = pneg %p64
    %p71 = scmp.eq.s32.totalorder %s13, 1
    %p72 = por %p70, %p71
    %p73 = scmp.ne.s32.totalorder %s65, %s68
    %p74 = scmp.eq.s32.totalorder %s13, 0
    %p75 = por %p73, %p74
    %p76 = scmp.ne.s32.totalorder %s65, %s68
    %p77 = scmp.eq.s32.totalorder %s18, 1
    %p78 = por %p76, %p77
    %p79 = scmp.ne.s32.totalorder %s68, %s69
    %p80 = scmp.eq.s32.totalorder %s18, 0
    %p81 = por %p79, %p80
    %p82 = scmp.ne.s32.totalorder %s68, %s69
    %p83 = scmp.eq.s32.totalorder %s19, 1
    %p84 = por %p82, %p83
    %p86 = scmp.ne.s32.totalorder %s69, %s85
    %p87 = scmp.eq.s32.totalorder %s19, 0
    %p88 = por %p86, %p87
    %s89 = ssub.s32 %s20, %s32
    %s90 = ssub.s32 %s21, %s28
    %s91 = sor.u32 %s89, %s90
    %p92 = scmp.eq.s32.totalorder %s91, 0
    %s94 = sadd.s32 %s93, 1
    %s95 = scalar_select %p92, %s93, %s94
    %p98 = pneg %p92
    %p99 = scmp.eq.s32.totalorder %s13, 1
    %p100 = por %p98, %p99
    %p101 = scmp.ne.s32.totalorder %s93, %s96
    %p102 = scmp.eq.s32.totalorder %s13, 0
    %p103 = por %p101, %p102
    %p104 = scmp.ne.s32.totalorder %s93, %s96
    %p105 = scmp.eq.s32.totalorder %s18, 1
    %p106 = por %p104, %p105
    %p107 = scmp.ne.s32.totalorder %s96, %s97
    %p108 = scmp.eq.s32.totalorder %s18, 0
    %p109 = por %p107, %p108
    %p110 = scmp.ne.s32.totalorder %s96, %s97
    %p111 = scmp.eq.s32.totalorder %s19, 1
    %p112 = por %p110, %p111
    %p114 = scmp.ne.s32.totalorder %s97, %s113
    %p115 = scmp.eq.s32.totalorder %s19, 0
    %p116 = por %p114, %p115
    %s117 = ssub.s32 %s20, %s32
    %s118 = ssub.s32 %s21, %s28
    %s119 = sor.u32 %s117, %s118
    %p120 = scmp.eq.s32.totalorder %s119, 0
    %s122 = sadd.s32 %s121, 1
    %s123 = scalar_select %p120, %s121, %s122
    %p126 = pneg %p120
    %p127 = scmp.eq.s32.totalorder %s13, 1
    %p128 = por %p126, %p127
    %p129 = scmp.ne.s32.totalorder %s121, %s124
    %p130 = scmp.eq.s32.totalorder %s13, 0
    %p131 = por %p129, %p130
    %p132 = scmp.ne.s32.totalorder %s121, %s124
    %p133 = scmp.eq.s32.totalorder %s18, 1
    %p134 = por %p132, %p133
    %p135 = scmp.ne.s32.totalorder %s124, %s125
    %p136 = scmp.eq.s32.totalorder %s18, 0
    %p137 = por %p135, %p136
    %p138 = scmp.ne.s32.totalorder %s124, %s125
    %p139 = scmp.eq.s32.totalorder %s19, 1
    %p140 = por %p138, %p139
    %p142 = scmp.ne.s32.totalorder %s125, %s141
    %p143 = scmp.eq.s32.totalorder %s19, 0
    %p144 = por %p142, %p143
    %s145 = ssub.s32 %s20, %s32
    %s146 = ssub.s32 %s21, %s28
    %s147 = sor.u32 %s145, %s146
    %p148 = scmp.eq.s32.totalorder %s147, 0
    %s150 = sadd.s32 %s149, 1
    %s151 = scalar_select %p148, %s149, %s150
    %p154 = pneg %p148
    %p155 = scmp.eq.s32.totalorder %s13, 1
    %p156 = por %p154, %p155
    %p157 = scmp.ne.s32.totalorder %s149, %s152
    %p158 = scmp.eq.s32.totalorder %s13, 0
    %p159 = por %p157, %p158
    %p160 = scmp.ne.s32.totalorder %s149, %s152
    %p161 = scmp.eq.s32.totalorder %s18, 1
    %p162 = por %p160, %p161
    %p163 = scmp.ne.s32.totalorder %s152, %s153
    %p164 = scmp.eq.s32.totalorder %s18, 0
    %p165 = por %p163, %p164
    %p166 = scmp.ne.s32.totalorder %s152, %s153
    %p167 = scmp.eq.s32.totalorder %s19, 1
    %p168 = por %p166, %p167
    %p170 = scmp.ne.s32.totalorder %s153, %s169
    %p171 = scmp.eq.s32.totalorder %s19, 0
    %p172 = por %p170, %p171
    %s173 = ssub.s32 %s20, %s32
    %s174 = ssub.s32 %s21, %s28
    %s175 = sor.u32 %s173, %s174
    %p176 = scmp.eq.s32.totalorder %s175, 0
    %s178 = sadd.s32 %s177, 1
    %s179 = scalar_select %p176, %s177, %s178
    %p182 = pneg %p176
    %p183 = scmp.eq.s32.totalorder %s13, 1
    %p184 = por %p182, %p183
    %p185 = scmp.ne.s32.totalorder %s177, %s180
    %p186 = scmp.eq.s32.totalorder %s13, 0
    %p187 = por %p185, %p186
    %p188 = scmp.ne.s32.totalorder %s177, %s180
    %p189 = scmp.eq.s32.totalorder %s18, 1
    %p190 = por %p188, %p189
    %p191 = scmp.ne.s32.totalorder %s180, %s181
    %p192 = scmp.eq.s32.totalorder %s18, 0
    %p193 = por %p191, %p192
    %p194 = scmp.ne.s32.totalorder %s180, %s181
    %p195 = scmp.eq.s32.totalorder %s19, 1
    %p196 = por %p194, %p195
    %p198 = scmp.ne.s32.totalorder %s181, %s197
    %p199 = scmp.eq.s32.totalorder %s19, 0
    %p200 = por %p198, %p199
    %s201 = ssub.s32 %s20, %s32
    %s202 = ssub.s32 %s21, %s28
    %s203 = sor.u32 %s201, %s202
    %p204 = scmp.eq.s32.totalorder %s203, 0
    %s206 = sadd.s32 %s205, 1
    %s207 = scalar_select %p204, %s205, %s206
    %p210 = pneg %p204
    %p211 = scmp.eq.s32.totalorder %s13, 1
    %p212 = por %p210, %p211
    %p213 = scmp.ne.s32.totalorder %s205, %s208
    %p214 = scmp.eq.s32.totalorder %s13, 0
    %p215 = por %p213, %p214
    %p216 = scmp.ne.s32.totalorder %s205, %s208
    %p217 = scmp.eq.s32.totalorder %s18, 1
    %p218 = por %p216, %p217
    %p219 = scmp.ne.s32.totalorder %s208, %s209
    %p220 = scmp.eq.s32.totalorder %s18, 0
    %p221 = por %p219, %p220
    %p222 = scmp.ne.s32.totalorder %s208, %s209
    %p223 = scmp.eq.s32.totalorder %s19, 1
    %p224 = por %p222, %p223
    %p226 = scmp.ne.s32.totalorder %s209, %s225
    %p227 = scmp.eq.s32.totalorder %s19, 0
    %p228 = por %p226, %p227
    %p229 = scmp.le.s32.totalorder 1, %s13
    %p230 = scmp.lt.s32.totalorder %s13, 3
    %p231 = pnand %p229, %p230
    %p232 = pneg %p231
    // Predicated region
    $region9: #{light_bag_forward.2} parent=5 // pred_check
      _
    $region10: #{light_bag_forward.2} parent=5 // pred_check_branch
      %234 = sbr.rel (%p231) target = $region12
    $region11: #{light_bag_forward.2} parent=5 // pred_region
      %s235 = ssub.s32 %s13, 1
    $region12: #{light_bag_forward.2} parent=5 // pred_fallthru
      _
    %p236 = scmp.lt.s32.totalorder %s13, 2
    // Predicated region
    $region13: #{light_bag_forward.2} parent=5 // pred_check
      %p237 = pneg %p236
    $region14: #{light_bag_forward.2} parent=5 // pred_check_branch
      %239 = sbr.rel (%p237) target = $region16
    $region15: #{light_bag_forward.2} parent=5 // pred_region
      // Predicated region
      $region17: #{light_bag_forward.2} parent=15 // pred_check
        %p240 = pneg %p47
      $region18: #{light_bag_forward.2} parent=15 // pred_check_branch
        %242 = sbr.rel (%p240) target = $region20
      $region19: #{light_bag_forward.2} parent=15 // pred_region
        %s243 = smul.u32 2, %s21
        %p244 = scmp.lt.s32.totalorder %s20, 1
        %s245 = scalar_select %p244, %s20, 1
        %p246 = scmp.lt.s32.totalorder %s243, 1
        %s247 = scalar_select %p246, %s243, 1
        %s248 = smul.addr %s245, 2
        %s249 = sadd.s32 %s247, %s248
        %s250 = smul.addr %s249, 4
        %s251 = scalar_lea.vmem %s0, %s250
        %s252 = smul.u32 2, %s21
      $region20: #{light_bag_forward.2} parent=15 // pred_fallthru
        _
      // Predicated region
      $region21: #{light_bag_forward.2} parent=15 // pred_check
        %p253 = pneg %p75
      $region22: #{light_bag_forward.2} parent=15 // pred_check_branch
        %255 = sbr.rel (%p253) target = $region24
      $region23: #{light_bag_forward.2} parent=15 // pred_region
        %s256 = smul.u32 2, %s21
        %p257 = scmp.lt.s32.totalorder %s20, 1
        %s258 = scalar_select %p257, %s20, 1
        %p259 = scmp.lt.s32.totalorder %s256, 1
        %s260 = scalar_select %p259, %s256, 1
        %s261 = smul.addr %s258, 2
        %s262 = sadd.s32 %s260, %s261
        %s263 = smul.addr %s262, 4
        %s264 = scalar_lea.vmem %s1, %s263
        %s265 = smul.u32 2, %s21
      $region24: #{light_bag_forward.2} parent=15 // pred_fallthru
        _
      // Predicated region
      $region25: #{light_bag_forward.2} parent=15 // pred_check
        %p266 = pneg %p103
      $region26: #{light_bag_forward.2} parent=15 // pred_check_branch
        %268 = sbr.rel (%p266) target = $region28
      $region27: #{light_bag_forward.2} parent=15 // pred_region
        %s269 = smul.u32 2, %s21
        %p270 = scmp.lt.s32.totalorder %s20, 1
        %s271 = scalar_select %p270, %s20, 1
        %p272 = scmp.lt.s32.totalorder %s269, 1
        %s273 = scalar_select %p272, %s269, 1
        %s274 = smul.addr %s271, 2
        %s275 = sadd.s32 %s273, %s274
        %s276 = smul.addr %s275, 4
        %s277 = scalar_lea.vmem %s2, %s276
        %s278 = smul.u32 2, %s21
      $region28: #{light_bag_forward.2} parent=15 // pred_fallthru
        _
    $region16: #{light_bag_forward.2} parent=5 // pred_fallthru
      _
    %p279 = scmp.le.s32.totalorder 1, %s13
    %p280 = scmp.lt.s32.totalorder %s13, 3
    %p281 = pnand %p279, %p280
    %p282 = pneg %p281
    // Predicated region
    $region29: #{light_bag_forward.2} parent=5 // pred_check
      _
    $region30: #{light_bag_forward.2} parent=5 // pred_check_branch
      %284 = sbr.rel (%p281) target = $region32
    $region31: #{light_bag_forward.2} parent=5 // pred_region
      %s285 = ssub.s32 %s13, 1
      %s286 = smul.u32 2, %s23
      %p287 = scmp.lt.s32.totalorder %s22, 1
      %s288 = scalar_select %p287, %s22, 1
      %p289 = scmp.lt.s32.totalorder %s286, 1
      %s290 = scalar_select %p289, %s286, 1
      %s291 = smul.addr %s288, 2
      %s292 = sadd.s32 %s290, %s291
      %s293 = smul.addr %s292, 4
      %s294 = scalar_lea.vmem %s0, %s293
      %p295 = pneg %p53
      %p296 = pneg %p50
      %s297 = smul.u32 2, %s23
      %p298 = scmp.lt.s32.totalorder %s22, 1
      %s299 = scalar_select %p298, %s22, 1
      %p300 = scmp.lt.s32.totalorder %s297, 1
      %s301 = scalar_select %p300, %s297, 1
      %s302 = smul.addr %s299, 2
      %s303 = sadd.s32 %s301, %s302
      %s304 = smul.addr %s303, 4
      %s305 = scalar_lea.vmem %s1, %s304
      %p306 = pneg %p81
      %p307 = pneg %p78
      %s308 = smul.u32 2, %s23
      %p309 = scmp.lt.s32.totalorder %s22, 1
      %s310 = scalar_select %p309, %s22, 1
      %p311 = scmp.lt.s32.totalorder %s308, 1
      %s312 = scalar_select %p311, %s308, 1
      %s313 = smul.addr %s310, 2
      %s314 = sadd.s32 %s312, %s313
      %s315 = smul.addr %s314, 4
      %s316 = scalar_lea.vmem %s2, %s315
      %p317 = pneg %p109
      %p318 = pneg %p106
      %p319 = pneg %p137
      %p320 = pneg %p134
      %p321 = scmp.lt.s32.totalorder %s22, 1
      %s322 = scalar_select %p321, %s22, 1
      %p323 = scmp.lt.s32.totalorder %s23, 0
      %s324 = scalar_select %p323, %s23, 0
      %s325 = sadd.s32 %s324, %s322
      %s326 = smul.addr %s325, 4
      %s327 = scalar_lea.vmem %s3, %s326
      %p328 = pneg %p165
      %p329 = pneg %p162
      %p330 = scmp.lt.s32.totalorder %s22, 1
      %s331 = scalar_select %p330, %s22, 1
      %p332 = scmp.lt.s32.totalorder %s23, 0
      %s333 = scalar_select %p332, %s23, 0
      %s334 = sadd.s32 %s333, %s331
      %s335 = smul.addr %s334, 4
      %s336 = scalar_lea.vmem %s4, %s335
      %p337 = pneg %p193
      %p338 = pneg %p190
      %p339 = scmp.lt.s32.totalorder %s22, 1
      %s340 = scalar_select %p339, %s22, 1
      %p341 = scmp.lt.s32.totalorder %s23, 0
      %s342 = scalar_select %p341, %s23, 0
      %s343 = sadd.s32 %s342, %s340
      %s344 = smul.addr %s343, 4
      %s345 = scalar_lea.vmem %s5, %s344
      %p346 = pneg %p221
      %p347 = pneg %p218
      %p348 = scmp.lt.s32.totalorder %s22, 1
      %s349 = scalar_select %p348, %s22, 1
      %p350 = scmp.lt.s32.totalorder %s23, 0
      %s351 = scalar_select %p350, %s23, 0
      %s352 = sadd.s32 %s351, %s349
      %s353 = smul.addr %s352, 4
      %s354 = scalar_lea.vmem %s6, %s353
      %s355 = smul.u32 2, %s23
      %p356 = scmp.lt.s32.totalorder %s22, 1
      %s357 = scalar_select %p356, %s22, 1
      %p358 = scmp.lt.s32.totalorder %s355, 1
      %s359 = scalar_select %p358, %s355, 1
      %s360 = smul.addr %s357, 2
      %s361 = sadd.s32 %s359, %s360
      %s362 = smul.addr %s361, 4
      %s363 = scalar_lea.vmem %s0, %s362
      %s364 = smul.u32 2, %s23
      %s365 = smul.u32 2, %s23
      %p366 = scmp.lt.s32.totalorder %s22, 1
      %s367 = scalar_select %p366, %s22, 1
      %p368 = scmp.lt.s32.totalorder %s365, 1
      %s369 = scalar_select %p368, %s365, 1
      %s370 = smul.addr %s367, 2
      %s371 = sadd.s32 %s369, %s370
      %s372 = smul.addr %s371, 4
      %s373 = scalar_lea.vmem %s1, %s372
      %s374 = smul.u32 2, %s23
      %s375 = smul.u32 2, %s23
      %p376 = scmp.lt.s32.totalorder %s22, 1
      %s377 = scalar_select %p376, %s22, 1
      %p378 = scmp.lt.s32.totalorder %s375, 1
      %s379 = scalar_select %p378, %s375, 1
      %s380 = smul.addr %s377, 2
      %s381 = sadd.s32 %s379, %s380
      %s382 = smul.addr %s381, 4
      %s383 = scalar_lea.vmem %s2, %s382
      %s384 = smul.u32 2, %s23
      %p385 = scmp.lt.s32.totalorder %s22, 1
      %s386 = scalar_select %p385, %s22, 1
      %p387 = scmp.lt.s32.totalorder %s23, 0
      %s388 = scalar_select %p387, %s23, 0
      %s389 = sadd.s32 %s388, %s386
      %s390 = smul.addr %s389, 4
      %s391 = scalar_lea.vmem %s3, %s390
      %p392 = scmp.lt.s32.totalorder %s22, 1
      %s393 = scalar_select %p392, %s22, 1
      %p394 = scmp.lt.s32.totalorder %s23, 0
      %s395 = scalar_select %p394, %s23, 0
      %s396 = sadd.s32 %s395, %s393
      %s397 = smul.addr %s396, 4
      %s398 = scalar_lea.vmem %s4, %s397
      %p399 = scmp.lt.s32.totalorder %s22, 1
      %s400 = scalar_select %p399, %s22, 1
      %p401 = scmp.lt.s32.totalorder %s23, 0
      %s402 = scalar_select %p401, %s23, 0
      %s403 = sadd.s32 %s402, %s400
      %s404 = smul.addr %s403, 4
      %s405 = scalar_lea.vmem %s5, %s404
      %p406 = scmp.lt.s32.totalorder %s22, 1
      %s407 = scalar_select %p406, %s22, 1
      %p408 = scmp.lt.s32.totalorder %s23, 0
      %s409 = scalar_select %p408, %s23, 0
      %s410 = sadd.s32 %s409, %s407
      %s411 = smul.addr %s410, 4
      %s412 = scalar_lea.vmem %s6, %s411
      %v413 = vld [vmem:[%s363] sm:$0xff]
      %v414 = vld [vmem:[%s373] sm:$0xff]
      %v415 = vld [vmem:[%s383] sm:$0xff]
      %v416 = vsub.f32 0.0, %v415
      %v417 = vmul.f32 %v416, 1.442695
      %v418 = vpow.pop %v417
      %v419 = vadd.f32 %v418, 1.0
      %v420 = vrcp.pop %v419
      %v421 = vmul.f32 1.0, %v420
      %v422 = vsub.f32 1.0, %v421
      %v423 = vmul.f32 %v422, %v414
      %v424 = vadd.f32 %v423, %v413
      %v425 = vmul.f32 %v421, %v413
      %v426 = vadd.f32 %v414, %v425
      %v428 = vcombine.high %v424, %v424
      %430 = vmatprep.subr.mxu0 %v428
      %431 = vmatpush1.xpose.msra.mxu0 %v424
      %432 = vmatprep.subr.mxu0 0.0
      %433 = vmatpush1.xpose.msra.mxu0 0.0
      %434 = vmatprep.subr.mxu0 0.0
      %435 = vmatpush1.xpose.msra.mxu0 0.0
      %436 = vmatprep.subr.mxu0 0.0
      %437 = vmatpush1.xpose.msra.mxu0 0.0
      %438 = vmatprep.subr.mxu0 0.0
      %439 = vmatpush1.xpose.msra.mxu0 0.0
      %440 = vmatprep.subr.mxu0 0.0
      %441 = vmatpush1.xpose.msra.mxu0 0.0
      %442 = vmatprep.subr.mxu0 0.0
      %443 = vmatpush1.xpose.msra.mxu0 0.0
      %444 = vmatprep.subr.mxu0 0.0
      %445 = vmatpush1.xpose.msra.mxu0 0.0
      %446 = vmatprep.subr.mxu0 0.0
      %447 = vmatpush1.xpose.msra.mxu0 0.0
      %448 = vmatprep.subr.mxu0 0.0
      %449 = vmatpush1.xpose.msra.mxu0 0.0
      %450 = vmatprep.subr.mxu0 0.0
      %451 = vmatpush1.xpose.msra.mxu0 0.0
      %452 = vmatprep.subr.mxu0 0.0
      %453 = vmatpush1.xpose.msra.mxu0 0.0
      %454 = vmatprep.subr.mxu0 0.0
      %455 = vmatpush1.xpose.msra.mxu0 0.0
      %456 = vmatprep.subr.mxu0 0.0
      %457 = vmatpush1.xpose.msra.mxu0 0.0
      %458 = vmatprep.subr.mxu0 0.0
      %459 = vmatpush1.xpose.msra.mxu0 0.0
      %460 = vmatprep.subr.mxu0 0.0
      %461 = vmatpush1.xpose.msra.mxu0 0.0
      %462 = vmatprep.subr.mxu0 0.0
      %463 = vmatpush1.xpose.msra.mxu0 0.0
      %464 = vmatprep.subr.mxu0 0.0
      %465 = vmatpush1.xpose.msra.mxu0 0.0
      %466 = vmatprep.subr.mxu0 0.0
      %467 = vmatpush1.xpose.msra.mxu0 0.0
      %468 = vmatprep.subr.mxu0 0.0
      %469 = vmatpush1.xpose.msra.mxu0 0.0
      %470 = vmatprep.subr.mxu0 0.0
      %471 = vmatpush1.xpose.msra.mxu0 0.0
      %472 = vmatprep.subr.mxu0 0.0
      %473 = vmatpush1.xpose.msra.mxu0 0.0
      %474 = vmatprep.subr.mxu0 0.0
      %475 = vmatpush1.xpose.msra.mxu0 0.0
      %476 = vmatprep.subr.mxu0 0.0
      %477 = vmatpush1.xpose.msra.mxu0 0.0
      %478 = vmatprep.subr.mxu0 0.0
      %479 = vmatpush1.xpose.msra.mxu0 0.0
      %480 = vmatprep.subr.mxu0 0.0
      %481 = vmatpush1.xpose.msra.mxu0 0.0
      %482 = vmatprep.subr.mxu0 0.0
      %483 = vmatpush1.xpose.msra.mxu0 0.0
      %484 = vmatprep.subr.mxu0 0.0
      %485 = vmatpush1.xpose.msra.mxu0 0.0
      %486 = vmatprep.subr.mxu0 0.0
      %487 = vmatpush1.xpose.msra.mxu0 0.0
      %488 = vmatprep.subr.mxu0 0.0
      %489 = vmatpush1.xpose.msra.mxu0 0.0
      %490 = vmatprep.subr.mxu0 0.0
      %491 = vmatpush1.xpose.msra.mxu0 0.0
      %492 = vmatprep.subr.mxu0 0.0
      %493 = vmatpush1.xpose.msra.mxu0 0.0
      %494 = vmatprep.mubr.f32.mxu0 %v428
      %495 = vmatmul.mubr.f32.gmra.mrb[0].mxu0 %v424
      %v496 = vpop.f32.mrb[0].mxu0
      %v497 = vadd.f32 0.0, %v496
      %v498 = vpop.f32.mrb[0].mxu0
      %499 = vdwg.mxu0
      %vm500 = vcmask 27648
      %501 = vst.msk [vmem:[%s391] sm:$0xf] %vm500, %v497
      %v503 = vcombine.high %v426, %v426
      %505 = vmatprep.subr.mxu0 %v503
      %506 = vmatpush1.xpose.msra.mxu0 %v426
      %507 = vmatprep.subr.mxu0 0.0
      %508 = vmatpush1.xpose.msra.mxu0 0.0
      %509 = vmatprep.subr.mxu0 0.0
      %510 = vmatpush1.xpose.msra.mxu0 0.0
      %511 = vmatprep.subr.mxu0 0.0
      %512 = vmatpush1.xpose.msra.mxu0 0.0
      %513 = vmatprep.subr.mxu0 0.0
      %514 = vmatpush1.xpose.msra.mxu0 0.0
      %515 = vmatprep.subr.mxu0 0.0
      %516 = vmatpush1.xpose.msra.mxu0 0.0
      %517 = vmatprep.subr.mxu0 0.0
      %518 = vmatpush1.xpose.msra.mxu0 0.0
      %519 = vmatprep.subr.mxu0 0.0
      %520 = vmatpush1.xpose.msra.mxu0 0.0
      %521 = vmatprep.subr.mxu0 0.0
      %522 = vmatpush1.xpose.msra.mxu0 0.0
      %523 = vmatprep.subr.mxu0 0.0
      %524 = vmatpush1.xpose.msra.mxu0 0.0
      %525 = vmatprep.subr.mxu0 0.0
      %526 = vmatpush1.xpose.msra.mxu0 0.0
      %527 = vmatprep.subr.mxu0 0.0
      %528 = vmatpush1.xpose.msra.mxu0 0.0
      %529 = vmatprep.subr.mxu0 0.0
      %530 = vmatpush1.xpose.msra.mxu0 0.0
      %531 = vmatprep.subr.mxu0 0.0
      %532 = vmatpush1.xpose.msra.mxu0 0.0
      %533 = vmatprep.subr.mxu0 0.0
      %534 = vmatpush1.xpose.msra.mxu0 0.0
      %535 = vmatprep.subr.mxu0 0.0
      %536 = vmatpush1.xpose.msra.mxu0 0.0
      %537 = vmatprep.subr.mxu0 0.0
      %538 = vmatpush1.xpose.msra.mxu0 0.0
      %539 = vmatprep.subr.mxu0 0.0
      %540 = vmatpush1.xpose.msra.mxu0 0.0
      %541 = vmatprep.subr.mxu0 0.0
      %542 = vmatpush1.xpose.msra.mxu0 0.0
      %543 = vmatprep.subr.mxu0 0.0
      %544 = vmatpush1.xpose.msra.mxu0 0.0
      %545 = vmatprep.subr.mxu0 0.0
      %546 = vmatpush1.xpose.msra.mxu0 0.0
      %547 = vmatprep.subr.mxu0 0.0
      %548 = vmatpush1.xpose.msra.mxu0 0.0
      %549 = vmatprep.subr.mxu0 0.0
      %550 = vmatpush1.xpose.msra.mxu0 0.0
      %551 = vmatprep.subr.mxu0 0.0
      %552 = vmatpush1.xpose.msra.mxu0 0.0
      %553 = vmatprep.subr.mxu0 0.0
      %554 = vmatpush1.xpose.msra.mxu0 0.0
      %555 = vmatprep.subr.mxu0 0.0
      %556 = vmatpush1.xpose.msra.mxu0 0.0
      %557 = vmatprep.subr.mxu0 0.0
      %558 = vmatpush1.xpose.msra.mxu0 0.0
      %559 = vmatprep.subr.mxu0 0.0
      %560 = vmatpush1.xpose.msra.mxu0 0.0
      %561 = vmatprep.subr.mxu0 0.0
      %562 = vmatpush1.xpose.msra.mxu0 0.0
      %563 = vmatprep.subr.mxu0 0.0
      %564 = vmatpush1.xpose.msra.mxu0 0.0
      %565 = vmatprep.subr.mxu0 0.0
      %566 = vmatpush1.xpose.msra.mxu0 0.0
      %567 = vmatprep.subr.mxu0 0.0
      %568 = vmatpush1.xpose.msra.mxu0 0.0
      %569 = vmatprep.mubr.f32.mxu0 %v503
      %570 = vmatmul.mubr.f32.gmra.mrb[0].mxu0 %v426
      %v571 = vpop.f32.mrb[0].mxu0
      %v572 = vadd.f32 0.0, %v571
      %v573 = vpop.f32.mrb[0].mxu0
      %574 = vdwg.mxu0
      %575 = vst.msk [vmem:[%s398] sm:$0xf] %vm500, %v572
      %vm576 = vcmask 1043456
      %v577 = vsel %vm576, %v424, 0.0
      %v578 = vsel %vm576, %v428, 0.0
      %v579 = vadd.f32 %v577, %v578
      %580 = vadd.xlane.f32.xlu0 %v579
      %v581 = vpop.xlane.xlu0 %580
      %vm582 = vcmask 3072
      %583 = vst.msk [vmem:[%s405] sm:$0xf] %vm582, %v581
      %v584 = vsel %vm576, %v426, 0.0
      %v585 = vsel %vm576, %v503, 0.0
      %v586 = vadd.f32 %v584, %v585
      %587 = vadd.xlane.f32.xlu0 %v586
      %v588 = vpop.xlane.xlu0 %587
      %589 = vst.msk [vmem:[%s412] sm:$0xf] %vm582, %v588
      %p590 = scmp.lt.s32.totalorder %s22, 1
      %s591 = scalar_select %p590, %s22, 1
      %p592 = scmp.lt.s32.totalorder %s23, 0
      %s593 = scalar_select %p592, %s23, 0
      %s594 = sadd.s32 %s593, %s591
      %s595 = smul.addr %s594, 4
      %s596 = scalar_lea.vmem %s3, %s595
      %p597 = scmp.lt.s32.totalorder %s22, 1
      %s598 = scalar_select %p597, %s22, 1
      %p599 = scmp.lt.s32.totalorder %s23, 0
      %s600 = scalar_select %p599, %s23, 0
      %s601 = sadd.s32 %s600, %s598
      %s602 = smul.addr %s601, 4
      %s603 = scalar_lea.vmem %s4, %s602
      %p604 = scmp.lt.s32.totalorder %s22, 1
      %s605 = scalar_select %p604, %s22, 1
      %p606 = scmp.lt.s32.totalorder %s23, 0
      %s607 = scalar_select %p606, %s23, 0
      %s608 = sadd.s32 %s607, %s605
      %s609 = smul.addr %s608, 4
      %s610 = scalar_lea.vmem %s5, %s609
      %p611 = scmp.lt.s32.totalorder %s22, 1
      %s612 = scalar_select %p611, %s22, 1
      %p613 = scmp.lt.s32.totalorder %s23, 0
      %s614 = scalar_select %p613, %s23, 0
      %s615 = sadd.s32 %s614, %s612
      %s616 = smul.addr %s615, 4
      %s617 = scalar_lea.vmem %s6, %s616
      // Predicated region
      $region33: #{light_bag_forward.2} parent=31 // pred_check
        %p618 = pneg %p134
      $region34: #{light_bag_forward.2} parent=31 // pred_check_branch
        %620 = sbr.rel (%p618) target = $region36
      $region35: #{light_bag_forward.2} parent=31 // pred_region
        _
      $region36: #{light_bag_forward.2} parent=31 // pred_fallthru
        _
      // Predicated region
      $region37: #{light_bag_forward.2} parent=31 // pred_check
        %p621 = pneg %p162
      $region38: #{light_bag_forward.2} parent=31 // pred_check_branch
        %623 = sbr.rel (%p621) target = $region40
      $region39: #{light_bag_forward.2} parent=31 // pred_region
        _
      $region40: #{light_bag_forward.2} parent=31 // pred_fallthru
        _
      // Predicated region
      $region41: #{light_bag_forward.2} parent=31 // pred_check
        %p624 = pneg %p190
      $region42: #{light_bag_forward.2} parent=31 // pred_check_branch
        %626 = sbr.rel (%p624) target = $region44
      $region43: #{light_bag_forward.2} parent=31 // pred_region
        _
      $region44: #{light_bag_forward.2} parent=31 // pred_fallthru
        _
      // Predicated region
      $region45: #{light_bag_forward.2} parent=31 // pred_check
        %p627 = pneg %p218
      $region46: #{light_bag_forward.2} parent=31 // pred_check_branch
        %629 = sbr.rel (%p627) target = $region48
      $region47: #{light_bag_forward.2} parent=31 // pred_region
        _
      $region48: #{light_bag_forward.2} parent=31 // pred_fallthru
        _
    $region32: #{light_bag_forward.2} parent=5 // pred_fallthru
      _
    %p630 = scmp.le.s32.totalorder 2, %s13
    // Predicated region
    $region49: #{light_bag_forward.2} parent=5 // pred_check
      %p631 = pneg %p630
    $region50: #{light_bag_forward.2} parent=5 // pred_check_branch
      %633 = sbr.rel (%p631) target = $region52
    $region51: #{light_bag_forward.2} parent=5 // pred_region
      %s634 = ssub.s32 %s13, 2
      // Predicated region
      $region53: #{light_bag_forward.2} parent=51 // pred_check
        %p635 = pneg %p140
      $region54: #{light_bag_forward.2} parent=51 // pred_check_branch
        %637 = sbr.rel (%p635) target = $region56
      $region55: #{light_bag_forward.2} parent=51 // pred_region
        %p638 = scmp.lt.s32.totalorder %s24, 1
        %s639 = scalar_select %p638, %s24, 1
        %p640 = scmp.lt.s32.totalorder %s25, 0
        %s641 = scalar_select %p640, %s25, 0
        %s642 = sadd.s32 %s641, %s639
        %s643 = smul.addr %s642, 4
        %s644 = scalar_lea.vmem %s3, %s643
      $region56: #{light_bag_forward.2} parent=51 // pred_fallthru
        _
      // Predicated region
      $region57: #{light_bag_forward.2} parent=51 // pred_check
        %p645 = pneg %p168
      $region58: #{light_bag_forward.2} parent=51 // pred_check_branch
        %647 = sbr.rel (%p645) target = $region60
      $region59: #{light_bag_forward.2} parent=51 // pred_region
        %p648 = scmp.lt.s32.totalorder %s24, 1
        %s649 = scalar_select %p648, %s24, 1
        %p650 = scmp.lt.s32.totalorder %s25, 0
        %s651 = scalar_select %p650, %s25, 0
        %s652 = sadd.s32 %s651, %s649
        %s653 = smul.addr %s652, 4
        %s654 = scalar_lea.vmem %s4, %s653
      $region60: #{light_bag_forward.2} parent=51 // pred_fallthru
        _
      // Predicated region
      $region61: #{light_bag_forward.2} parent=51 // pred_check
        %p655 = pneg %p196
      $region62: #{light_bag_forward.2} parent=51 // pred_check_branch
        %657 = sbr.rel (%p655) target = $region64
      $region63: #{light_bag_forward.2} parent=51 // pred_region
        %p658 = scmp.lt.s32.totalorder %s24, 1
        %s659 = scalar_select %p658, %s24, 1
        %p660 = scmp.lt.s32.totalorder %s25, 0
        %s661 = scalar_select %p660, %s25, 0
        %s662 = sadd.s32 %s661, %s659
        %s663 = smul.addr %s662, 4
        %s664 = scalar_lea.vmem %s5, %s663
      $region64: #{light_bag_forward.2} parent=51 // pred_fallthru
        _
      // Predicated region
      $region65: #{light_bag_forward.2} parent=51 // pred_check
        %p665 = pneg %p224
      $region66: #{light_bag_forward.2} parent=51 // pred_check_branch
        %667 = sbr.rel (%p665) target = $region68
      $region67: #{light_bag_forward.2} parent=51 // pred_region
        %p668 = scmp.lt.s32.totalorder %s24, 1
        %s669 = scalar_select %p668, %s24, 1
        %p670 = scmp.lt.s32.totalorder %s25, 0
        %s671 = scalar_select %p670, %s25, 0
        %s672 = sadd.s32 %s671, %s669
        %s673 = smul.addr %s672, 4
        %s674 = scalar_lea.vmem %s6, %s673
      $region68: #{light_bag_forward.2} parent=51 // pred_fallthru
        _
    $region52: #{light_bag_forward.2} parent=5 // pred_fallthru
      _
  $region6: #{light_bag_forward.2} parent=0 // loop_footer
    %s17 = sadd.s32 1, %s13
  $region7: #{light_bag_forward.2} parent=0 // loop_footer_branch
    %12 = sbr.rel target = $region3
  $region8: #{light_bag_forward.2} parent=0 // loop_exit
    _

// kernel: light_bag_forward.3
$region0: #{light_bag_forward.3}
  #allocation0 [shape = 'u32[]', space=smem, size = 0x4, offset = 0x4, fixed_abs, tag = 'smem constant byte address 0x4 - core index']
  #allocation1 [shape = 'u32[144,128]{1,0:T(1,128)}', space=vmem, size = 0x12000, scoped, tag = 'internal scratch']
  %s0 = inlined_call_operand.vmem [shape: f32[2,4,256], index: 0, kind: input, shape index: {}]
  %s1 = inlined_call_operand.vmem [shape: f32[2,4,256], index: 1, kind: input, shape index: {}]
  %s2 = inlined_call_operand.vmem [shape: f32[2,4,256], index: 2, kind: input, shape index: {}]
  %s3 = inlined_call_operand.vmem [shape: f32[16,4], index: 3, kind: input, shape index: {}]
  %s4 = inlined_call_operand.vmem [shape: f32[16,4], index: 4, kind: input, shape index: {}]
  %s5 = inlined_call_operand.vmem [shape: f32[16,1], index: 5, kind: input, shape index: {}]
  %s6 = inlined_call_operand.vmem [shape: f32[2,16,256], index: 6, kind: output, shape index: {}]
  %s7 = sld [smem:[#allocation0]]
  $region57: #{light_bag_forward.3} parent=0
    _
  %s9 = ssub.s32 1, %s7
  %s10 = scalar_select 0, %s9, %s7
  loop: start=0, step=1, limit=4
  $region2: #{light_bag_forward.3} parent=0 // loop_pre_header
    _
  $region3: #{light_bag_forward.3} parent=0 // loop_header
    %s12 = sphi 0, %s16
    %p13 = scmp.ge.s32.totalorder %s12, 4
    %s19 = sphi 0, %s31
    %s20 = sphi 0, %s27
    %s21 = sphi 0, %s19
    %s22 = sphi 0, %s20
    %s23 = sphi 0, %s21
    %s24 = sphi 0, %s22
    %s36 = sphi 0, %s38
    %s39 = sphi 0, %s36
    %s40 = sphi 0, %s39
    %s56 = sphi 0, %s40
    %s64 = sphi 0, %s66
    %s67 = sphi 0, %s64
    %s68 = sphi 0, %s67
    %s84 = sphi 0, %s68
    %s92 = sphi 0, %s94
    %s95 = sphi 0, %s92
    %s96 = sphi 0, %s95
    %s112 = sphi 0, %s96
    %s116 = sphi 0, %s116
    %s118 = sphi 0, %s116
    %s119 = sphi 0, %s118
    %s133 = sphi 0, %s119
    %s137 = sphi 0, %s137
    %s139 = sphi 0, %s137
    %s140 = sphi 0, %s139
    %s154 = sphi 0, %s140
    %s158 = sphi 0, %s158
    %s160 = sphi 0, %s158
    %s161 = sphi 0, %s160
    %s175 = sphi 0, %s161
    %s183 = sphi 0, %s185
    %s186 = sphi 0, %s183
    %s187 = sphi 0, %s186
    %s203 = sphi 0, %s187
  $region4: #{light_bag_forward.3} parent=0 // loop_header_branch
    %15 = sbr.rel (%p13) target = $region8
  $region5: #{light_bag_forward.3} parent=0 // loop_body
    %s17 = ssub.s32 %s12, 1
    %s18 = ssub.s32 %s12, 2
    %s25 = sadd.s32 1, %s20
    %p26 = scmp.ge.s32.totalorder %s25, 1
    %s27 = scalar_select %p26, 0, %s25
    %s28 = sadd.s32 1, %s19
    %s29 = scalar_select %p26, %s28, %s19
    %p30 = scmp.ge.s32.totalorder %s29, 2
    %s31 = scalar_select %p30, 0, %s29
    %s32 = ssub.s32 %s19, %s31
    %s33 = ssub.s32 %s20, %s27
    %s34 = sor.u32 %s32, %s33
    %p35 = scmp.eq.s32.totalorder %s34, 0
    %s37 = sadd.s32 %s36, 1
    %s38 = scalar_select %p35, %s36, %s37
    %p41 = pneg %p35
    %p42 = scmp.eq.s32.totalorder %s12, 1
    %p43 = por %p41, %p42
    %p44 = scmp.ne.s32.totalorder %s36, %s39
    %p45 = scmp.eq.s32.totalorder %s12, 0
    %p46 = por %p44, %p45
    %p47 = scmp.ne.s32.totalorder %s36, %s39
    %p48 = scmp.eq.s32.totalorder %s17, 1
    %p49 = por %p47, %p48
    %p50 = scmp.ne.s32.totalorder %s39, %s40
    %p51 = scmp.eq.s32.totalorder %s17, 0
    %p52 = por %p50, %p51
    %p53 = scmp.ne.s32.totalorder %s39, %s40
    %p54 = scmp.eq.s32.totalorder %s18, 1
    %p55 = por %p53, %p54
    %p57 = scmp.ne.s32.totalorder %s40, %s56
    %p58 = scmp.eq.s32.totalorder %s18, 0
    %p59 = por %p57, %p58
    %s60 = ssub.s32 %s19, %s31
    %s61 = ssub.s32 %s20, %s27
    %s62 = sor.u32 %s60, %s61
    %p63 = scmp.eq.s32.totalorder %s62, 0
    %s65 = sadd.s32 %s64, 1
    %s66 = scalar_select %p63, %s64, %s65
    %p69 = pneg %p63
    %p70 = scmp.eq.s32.totalorder %s12, 1
    %p71 = por %p69, %p70
    %p72 = scmp.ne.s32.totalorder %s64, %s67
    %p73 = scmp.eq.s32.totalorder %s12, 0
    %p74 = por %p72, %p73
    %p75 = scmp.ne.s32.totalorder %s64, %s67
    %p76 = scmp.eq.s32.totalorder %s17, 1
    %p77 = por %p75, %p76
    %p78 = scmp.ne.s32.totalorder %s67, %s68
    %p79 = scmp.eq.s32.totalorder %s17, 0
    %p80 = por %p78, %p79
    %p81 = scmp.ne.s32.totalorder %s67, %s68
    %p82 = scmp.eq.s32.totalorder %s18, 1
    %p83 = por %p81, %p82
    %p85 = scmp.ne.s32.totalorder %s68, %s84
    %p86 = scmp.eq.s32.totalorder %s18, 0
    %p87 = por %p85, %p86
    %s88 = ssub.s32 %s19, %s31
    %s89 = ssub.s32 %s20, %s27
    %s90 = sor.u32 %s88, %s89
    %p91 = scmp.eq.s32.totalorder %s90, 0
    %s93 = sadd.s32 %s92, 1
    %s94 = scalar_select %p91, %s92, %s93
    %p97 = pneg %p91
    %p98 = scmp.eq.s32.totalorder %s12, 1
    %p99 = por %p97, %p98
    %p100 = scmp.ne.s32.totalorder %s92, %s95
    %p101 = scmp.eq.s32.totalorder %s12, 0
    %p102 = por %p100, %p101
    %p103 = scmp.ne.s32.totalorder %s92, %s95
    %p104 = scmp.eq.s32.totalorder %s17, 1
    %p105 = por %p103, %p104
    %p106 = scmp.ne.s32.totalorder %s95, %s96
    %p107 = scmp.eq.s32.totalorder %s17, 0
    %p108 = por %p106, %p107
    %p109 = scmp.ne.s32.totalorder %s95, %s96
    %p110 = scmp.eq.s32.totalorder %s18, 1
    %p111 = por %p109, %p110
    %p113 = scmp.ne.s32.totalorder %s96, %s112
    %p114 = scmp.eq.s32.totalorder %s18, 0
    %p115 = por %p113, %p114
    %s117 = sadd.s32 %s116, 1
    %p120 = scmp.eq.s32.totalorder %s12, 1
    %p121 = scmp.ne.s32.totalorder %s116, %s118
    %p122 = scmp.eq.s32.totalorder %s12, 0
    %p123 = por %p121, %p122
    %p124 = scmp.ne.s32.totalorder %s116, %s118
    %p125 = scmp.eq.s32.totalorder %s17, 1
    %p126 = por %p124, %p125
    %p127 = scmp.ne.s32.totalorder %s118, %s119
    %p128 = scmp.eq.s32.totalorder %s17, 0
    %p129 = por %p127, %p128
    %p130 = scmp.ne.s32.totalorder %s118, %s119
    %p131 = scmp.eq.s32.totalorder %s18, 1
    %p132 = por %p130, %p131
    %p134 = scmp.ne.s32.totalorder %s119, %s133
    %p135 = scmp.eq.s32.totalorder %s18, 0
    %p136 = por %p134, %p135
    %s138 = sadd.s32 %s137, 1
    %p141 = scmp.eq.s32.totalorder %s12, 1
    %p142 = scmp.ne.s32.totalorder %s137, %s139
    %p143 = scmp.eq.s32.totalorder %s12, 0
    %p144 = por %p142, %p143
    %p145 = scmp.ne.s32.totalorder %s137, %s139
    %p146 = scmp.eq.s32.totalorder %s17, 1
    %p147 = por %p145, %p146
    %p148 = scmp.ne.s32.totalorder %s139, %s140
    %p149 = scmp.eq.s32.totalorder %s17, 0
    %p150 = por %p148, %p149
    %p151 = scmp.ne.s32.totalorder %s139, %s140
    %p152 = scmp.eq.s32.totalorder %s18, 1
    %p153 = por %p151, %p152
    %p155 = scmp.ne.s32.totalorder %s140, %s154
    %p156 = scmp.eq.s32.totalorder %s18, 0
    %p157 = por %p155, %p156
    %s159 = sadd.s32 %s158, 1
    %p162 = scmp.eq.s32.totalorder %s12, 1
    %p163 = scmp.ne.s32.totalorder %s158, %s160
    %p164 = scmp.eq.s32.totalorder %s12, 0
    %p165 = por %p163, %p164
    %p166 = scmp.ne.s32.totalorder %s158, %s160
    %p167 = scmp.eq.s32.totalorder %s17, 1
    %p168 = por %p166, %p167
    %p169 = scmp.ne.s32.totalorder %s160, %s161
    %p170 = scmp.eq.s32.totalorder %s17, 0
    %p171 = por %p169, %p170
    %p172 = scmp.ne.s32.totalorder %s160, %s161
    %p173 = scmp.eq.s32.totalorder %s18, 1
    %p174 = por %p172, %p173
    %p176 = scmp.ne.s32.totalorder %s161, %s175
    %p177 = scmp.eq.s32.totalorder %s18, 0
    %p178 = por %p176, %p177
    %s179 = ssub.s32 %s19, %s31
    %s180 = ssub.s32 %s20, %s27
    %s181 = sor.u32 %s179, %s180
    %p182 = scmp.eq.s32.totalorder %s181, 0
    %s184 = sadd.s32 %s183, 1
    %s185 = scalar_select %p182, %s183, %s184
    %p188 = pneg %p182
    %p189 = scmp.eq.s32.totalorder %s12, 1
    %p190 = por %p188, %p189
    %p191 = scmp.ne.s32.totalorder %s183, %s186
    %p192 = scmp.eq.s32.totalorder %s12, 0
    %p193 = por %p191, %p192
    %p194 = scmp.ne.s32.totalorder %s183, %s186
    %p195 = scmp.eq.s32.totalorder %s17, 1
    %p196 = por %p194, %p195
    %p197 = scmp.ne.s32.totalorder %s186, %s187
    %p198 = scmp.eq.s32.totalorder %s17, 0
    %p199 = por %p197, %p198
    %p200 = scmp.ne.s32.totalorder %s186, %s187
    %p201 = scmp.eq.s32.totalorder %s18, 1
    %p202 = por %p200, %p201
    %p204 = scmp.ne.s32.totalorder %s187, %s203
    %p205 = scmp.eq.s32.totalorder %s18, 0
    %p206 = por %p204, %p205
    %p207 = scmp.le.s32.totalorder 1, %s12
    %p208 = scmp.lt.s32.totalorder %s12, 3
    %p209 = pnand %p207, %p208
    %p210 = pneg %p209
    // Predicated region
    $region9: #{light_bag_forward.3} parent=5 // pred_check
      _
    $region10: #{light_bag_forward.3} parent=5 // pred_check_branch
      %212 = sbr.rel (%p209) target = $region12
    $region11: #{light_bag_forward.3} parent=5 // pred_region
      %s213 = ssub.s32 %s12, 1
      // Predicated region
      $region13: #{light_bag_forward.3} parent=11 // pred_check
        %p214 = pneg %p129
      $region14: #{light_bag_forward.3} parent=11 // pred_check_branch
        %216 = sbr.rel (%p214) target = $region16
      $region15: #{light_bag_forward.3} parent=11 // pred_region
        _
      $region16: #{light_bag_forward.3} parent=11 // pred_fallthru
        _
      // Predicated region
      $region17: #{light_bag_forward.3} parent=11 // pred_check
        %p217 = pneg %p150
      $region18: #{light_bag_forward.3} parent=11 // pred_check_branch
        %219 = sbr.rel (%p217) target = $region20
      $region19: #{light_bag_forward.3} parent=11 // pred_region
        _
      $region20: #{light_bag_forward.3} parent=11 // pred_fallthru
        _
      // Predicated region
      $region21: #{light_bag_forward.3} parent=11 // pred_check
        %p220 = pneg %p171
      $region22: #{light_bag_forward.3} parent=11 // pred_check_branch
        %222 = sbr.rel (%p220) target = $region24
      $region23: #{light_bag_forward.3} parent=11 // pred_region
        _
      $region24: #{light_bag_forward.3} parent=11 // pred_fallthru
        _
    $region12: #{light_bag_forward.3} parent=5 // pred_fallthru
      _
    %p223 = scmp.lt.s32.totalorder %s12, 2
    // Predicated region
    $region25: #{light_bag_forward.3} parent=5 // pred_check
      %p224 = pneg %p223
    $region26: #{light_bag_forward.3} parent=5 // pred_check_branch
      %226 = sbr.rel (%p224) target = $region28
    $region27: #{light_bag_forward.3} parent=5 // pred_region
      // Predicated region
      $region29: #{light_bag_forward.3} parent=27 // pred_check
        %p227 = pneg %p46
      $region30: #{light_bag_forward.3} parent=27 // pred_check_branch
        %229 = sbr.rel (%p227) target = $region32
      $region31: #{light_bag_forward.3} parent=27 // pred_region
        %s230 = smul.u32 2, %s20
        %p231 = scmp.lt.s32.totalorder %s19, 1
        %s232 = scalar_select %p231, %s19, 1
        %p233 = scmp.lt.s32.totalorder %s230, 1
        %s234 = scalar_select %p233, %s230, 1
        %s235 = smul.addr %s232, 2
        %s236 = sadd.s32 %s234, %s235
        %s237 = smul.addr %s236, 4
        %s238 = scalar_lea.vmem %s0, %s237
        %s239 = smul.u32 2, %s20
      $region32: #{light_bag_forward.3} parent=27 // pred_fallthru
        _
      // Predicated region
      $region33: #{light_bag_forward.3} parent=27 // pred_check
        %p240 = pneg %p74
      $region34: #{light_bag_forward.3} parent=27 // pred_check_branch
        %242 = sbr.rel (%p240) target = $region36
      $region35: #{light_bag_forward.3} parent=27 // pred_region
        %s243 = smul.u32 2, %s20
        %p244 = scmp.lt.s32.totalorder %s19, 1
        %s245 = scalar_select %p244, %s19, 1
        %p246 = scmp.lt.s32.totalorder %s243, 1
        %s247 = scalar_select %p246, %s243, 1
        %s248 = smul.addr %s245, 2
        %s249 = sadd.s32 %s247, %s248
        %s250 = smul.addr %s249, 4
        %s251 = scalar_lea.vmem %s1, %s250
        %s252 = smul.u32 2, %s20
      $region36: #{light_bag_forward.3} parent=27 // pred_fallthru
        _
      // Predicated region
      $region37: #{light_bag_forward.3} parent=27 // pred_check
        %p253 = pneg %p102
      $region38: #{light_bag_forward.3} parent=27 // pred_check_branch
        %255 = sbr.rel (%p253) target = $region40
      $region39: #{light_bag_forward.3} parent=27 // pred_region
        %s256 = smul.u32 2, %s20
        %p257 = scmp.lt.s32.totalorder %s19, 1
        %s258 = scalar_select %p257, %s19, 1
        %p259 = scmp.lt.s32.totalorder %s256, 1
        %s260 = scalar_select %p259, %s256, 1
        %s261 = smul.addr %s258, 2
        %s262 = sadd.s32 %s260, %s261
        %s263 = smul.addr %s262, 4
        %s264 = scalar_lea.vmem %s2, %s263
        %s265 = smul.u32 2, %s20
      $region40: #{light_bag_forward.3} parent=27 // pred_fallthru
        _
    $region28: #{light_bag_forward.3} parent=5 // pred_fallthru
      _
    %p266 = scmp.le.s32.totalorder 1, %s12
    %p267 = scmp.lt.s32.totalorder %s12, 3
    %p268 = pnand %p266, %p267
    %p269 = pneg %p268
    // Predicated region
    $region41: #{light_bag_forward.3} parent=5 // pred_check
      _
    $region42: #{light_bag_forward.3} parent=5 // pred_check_branch
      %271 = sbr.rel (%p268) target = $region44
    $region43: #{light_bag_forward.3} parent=5 // pred_region
      %s272 = ssub.s32 %s12, 1
      %s273 = smul.u32 2, %s22
      %p274 = scmp.lt.s32.totalorder %s21, 1
      %s275 = scalar_select %p274, %s21, 1
      %p276 = scmp.lt.s32.totalorder %s273, 1
      %s277 = scalar_select %p276, %s273, 1
      %s278 = smul.addr %s275, 2
      %s279 = sadd.s32 %s277, %s278
      %s280 = smul.addr %s279, 4
      %s281 = scalar_lea.vmem %s0, %s280
      %p282 = pneg %p52
      %p283 = pneg %p49
      %s284 = smul.u32 2, %s22
      %p285 = scmp.lt.s32.totalorder %s21, 1
      %s286 = scalar_select %p285, %s21, 1
      %p287 = scmp.lt.s32.totalorder %s284, 1
      %s288 = scalar_select %p287, %s284, 1
      %s289 = smul.addr %s286, 2
      %s290 = sadd.s32 %s288, %s289
      %s291 = smul.addr %s290, 4
      %s292 = scalar_lea.vmem %s1, %s291
      %p293 = pneg %p80
      %p294 = pneg %p77
      %s295 = smul.u32 2, %s22
      %p296 = scmp.lt.s32.totalorder %s21, 1
      %s297 = scalar_select %p296, %s21, 1
      %p298 = scmp.lt.s32.totalorder %s295, 1
      %s299 = scalar_select %p298, %s295, 1
      %s300 = smul.addr %s297, 2
      %s301 = sadd.s32 %s299, %s300
      %s302 = smul.addr %s301, 4
      %s303 = scalar_lea.vmem %s2, %s302
      %p304 = pneg %p108
      %p305 = pneg %p105
      %p306 = pneg %p129
      %p307 = pneg %p126
      %p308 = pneg %p150
      %p309 = pneg %p147
      %p310 = pneg %p171
      %p311 = pneg %p168
      %p312 = pneg %p199
      %p313 = pneg %p196
      %s314 = smul.u32 2, %s22
      %p315 = scmp.lt.s32.totalorder %s21, 1
      %s316 = scalar_select %p315, %s21, 1
      %p317 = scmp.lt.s32.totalorder %s314, 1
      %s318 = scalar_select %p317, %s314, 1
      %s319 = smul.addr %s316, 4
      %s320 = sadd.s32 %s318, %s319
      %s321 = smul.addr %s320, 8
      %s322 = scalar_lea.vmem %s6, %s321
      %s323 = smul.u32 2, %s22
      %p324 = scmp.lt.s32.totalorder %s21, 1
      %s325 = scalar_select %p324, %s21, 1
      %p326 = scmp.lt.s32.totalorder %s323, 1
      %s327 = scalar_select %p326, %s323, 1
      %s328 = smul.addr %s325, 2
      %s329 = sadd.s32 %s327, %s328
      %s330 = smul.addr %s329, 4
      %s331 = scalar_lea.vmem %s0, %s330
      %s332 = smul.u32 2, %s22
      %s333 = smul.u32 2, %s22
      %p334 = scmp.lt.s32.totalorder %s21, 1
      %s335 = scalar_select %p334, %s21, 1
      %p336 = scmp.lt.s32.totalorder %s333, 1
      %s337 = scalar_select %p336, %s333, 1
      %s338 = smul.addr %s335, 2
      %s339 = sadd.s32 %s337, %s338
      %s340 = smul.addr %s339, 4
      %s341 = scalar_lea.vmem %s1, %s340
      %s342 = smul.u32 2, %s22
      %s343 = smul.u32 2, %s22
      %p344 = scmp.lt.s32.totalorder %s21, 1
      %s345 = scalar_select %p344, %s21, 1
      %p346 = scmp.lt.s32.totalorder %s343, 1
      %s347 = scalar_select %p346, %s343, 1
      %s348 = smul.addr %s345, 2
      %s349 = sadd.s32 %s347, %s348
      %s350 = smul.addr %s349, 4
      %s351 = scalar_lea.vmem %s2, %s350
      %s352 = smul.u32 2, %s22
      %s353 = smul.u32 2, %s22
      %p354 = scmp.lt.s32.totalorder %s21, 1
      %s355 = scalar_select %p354, %s21, 1
      %p356 = scmp.lt.s32.totalorder %s353, 1
      %s357 = scalar_select %p356, %s353, 1
      %s358 = smul.addr %s355, 4
      %s359 = sadd.s32 %s357, %s358
      %s360 = smul.addr %s359, 8
      %s361 = scalar_lea.vmem %s6, %s360
      %s362 = smul.u32 2, %s22
      %v363 = vld [vmem:[%s331] sm:$0xff]
      %v364 = vld [vmem:[%s341] sm:$0xff]
      %v365 = vld [vmem:[%s351] sm:$0xff]
      %v366 = vsub.f32 0.0, %v365
      %v367 = vmul.f32 %v366, 1.442695
      %v368 = vpow.pop %v367
      %v369 = vadd.f32 %v368, 1.0
      %v370 = vrcp.pop %v369
      %v371 = vmul.f32 1.0, %v370
      %v372 = vsub.f32 1.0, %v371
      %v373 = vmul.f32 %v372, %v364
      %v374 = vadd.f32 %v373, %v363
      %v375 = vmul.f32 %v371, %v363
      %v376 = vadd.f32 %v364, %v375
      %v377 = vld [vmem:[%s3] sm:$0xff]
      %v378 = vld [vmem:[%s3 + $0x8] sm:$0xff]
      %v379 = vld [vmem:[%s4] sm:$0xff]
      %v380 = vld [vmem:[%s4 + $0x8] sm:$0xff]
      %v382 = vcombine.high %v376, %v376
      %vm383 = vcmask 31744
      %v385 = vsel %vm383, %v379, 0
      %v388 = vsel %vm383, %v380, 0
      %vm390 = vcmask 1043456
      %v391 = vsel %vm390, %v376, 0
      %v393 = vsel %vm390, %v382, 0
      %395 = vmatprep.subr.mxu0 %v393
      %396 = vmatpush1.msra.mxu0 %v391
      %397 = vmatprep.subr.mxu0 0.0
      %398 = vmatpush1.msra.mxu0 0.0
      %399 = vmatprep.subr.mxu0 0.0
      %400 = vmatpush1.msra.mxu0 0.0
      %401 = vmatprep.subr.mxu0 0.0
      %402 = vmatpush1.msra.mxu0 0.0
      %403 = vmatprep.subr.mxu0 0.0
      %404 = vmatpush1.msra.mxu0 0.0
      %405 = vmatprep.subr.mxu0 0.0
      %406 = vmatpush1.msra.mxu0 0.0
      %407 = vmatprep.subr.mxu0 0.0
      %408 = vmatpush1.msra.mxu0 0.0
      %409 = vmatprep.subr.mxu0 0.0
      %410 = vmatpush1.msra.mxu0 0.0
      %411 = vmatprep.subr.mxu0 0.0
      %412 = vmatpush1.msra.mxu0 0.0
      %413 = vmatprep.subr.mxu0 0.0
      %414 = vmatpush1.msra.mxu0 0.0
      %415 = vmatprep.subr.mxu0 0.0
      %416 = vmatpush1.msra.mxu0 0.0
      %417 = vmatprep.subr.mxu0 0.0
      %418 = vmatpush1.msra.mxu0 0.0
      %419 = vmatprep.subr.mxu0 0.0
      %420 = vmatpush1.msra.mxu0 0.0
      %421 = vmatprep.subr.mxu0 0.0
      %422 = vmatpush1.msra.mxu0 0.0
      %423 = vmatprep.subr.mxu0 0.0
      %424 = vmatpush1.msra.mxu0 0.0
      %425 = vmatprep.subr.mxu0 0.0
      %426 = vmatpush1.msra.mxu0 0.0
      %427 = vmatprep.subr.mxu0 0.0
      %428 = vmatpush1.msra.mxu0 0.0
      %429 = vmatprep.subr.mxu0 0.0
      %430 = vmatpush1.msra.mxu0 0.0
      %431 = vmatprep.subr.mxu0 0.0
      %432 = vmatpush1.msra.mxu0 0.0
      %433 = vmatprep.subr.mxu0 0.0
      %434 = vmatpush1.msra.mxu0 0.0
      %435 = vmatprep.subr.mxu0 0.0
      %436 = vmatpush1.msra.mxu0 0.0
      %437 = vmatprep.subr.mxu0 0.0
      %438 = vmatpush1.msra.mxu0 0.0
      %439 = vmatprep.subr.mxu0 0.0
      %440 = vmatpush1.msra.mxu0 0.0
      %441 = vmatprep.subr.mxu0 0.0
      %442 = vmatpush1.msra.mxu0 0.0
      %443 = vmatprep.subr.mxu0 0.0
      %444 = vmatpush1.msra.mxu0 0.0
      %445 = vmatprep.subr.mxu0 0.0
      %446 = vmatpush1.msra.mxu0 0.0
      %447 = vmatprep.subr.mxu0 0.0
      %448 = vmatpush1.msra.mxu0 0.0
      %449 = vmatprep.subr.mxu0 0.0
      %450 = vmatpush1.msra.mxu0 0.0
      %451 = vmatprep.subr.mxu0 0.0
      %452 = vmatpush1.msra.mxu0 0.0
      %453 = vmatprep.subr.mxu0 0.0
      %454 = vmatpush1.msra.mxu0 0.0
      %455 = vmatprep.subr.mxu0 0.0
      %456 = vmatpush1.msra.mxu0 0.0
      %457 = vmatprep.subr.mxu0 0.0
      %458 = vmatpush1.msra.mxu0 0.0
      %459 = vmatprep.mubr.f32.mxu0 0.0
      %460 = vmatmul.mubr.f32.gmra.mrb[0].mxu0 %v385
      %v461 = vpop.f32.mrb[0].mxu0
      %v462 = vadd.f32 0.0, %v461
      %v463 = vpop.f32.mrb[0].mxu0
      %v464 = vadd.f32 0.0, %v463
      %465 = vmatprep.mubr.f32.mxu0 0.0
      %466 = vmatmul.mubr.f32.gmra.mrb[0].mxu0 %v388
      %v467 = vpop.f32.mrb[0].mxu0
      %v468 = vadd.f32 0.0, %v467
      %v469 = vpop.f32.mrb[0].mxu0
      %v470 = vadd.f32 0.0, %v469
      %471 = vdwg.mxu0
      %v473 = vcombine.high %v374, %v374
      %v475 = vsel %vm383, %v377, 0
      %v478 = vsel %vm383, %v378, 0
      %v480 = vsel %vm390, %v374, 0
      %v482 = vsel %vm390, %v473, 0
      %484 = vmatprep.subr.mxu0 %v482
      %485 = vmatpush1.msra.mxu0 %v480
      %486 = vmatprep.subr.mxu0 0.0
      %487 = vmatpush1.msra.mxu0 0.0
      %488 = vmatprep.subr.mxu0 0.0
      %489 = vmatpush1.msra.mxu0 0.0
      %490 = vmatprep.subr.mxu0 0.0
      %491 = vmatpush1.msra.mxu0 0.0
      %492 = vmatprep.subr.mxu0 0.0
      %493 = vmatpush1.msra.mxu0 0.0
      %494 = vmatprep.subr.mxu0 0.0
      %495 = vmatpush1.msra.mxu0 0.0
      %496 = vmatprep.subr.mxu0 0.0
      %497 = vmatpush1.msra.mxu0 0.0
      %498 = vmatprep.subr.mxu0 0.0
      %499 = vmatpush1.msra.mxu0 0.0
      %500 = vmatprep.subr.mxu0 0.0
      %501 = vmatpush1.msra.mxu0 0.0
      %502 = vmatprep.subr.mxu0 0.0
      %503 = vmatpush1.msra.mxu0 0.0
      %504 = vmatprep.subr.mxu0 0.0
      %505 = vmatpush1.msra.mxu0 0.0
      %506 = vmatprep.subr.mxu0 0.0
      %507 = vmatpush1.msra.mxu0 0.0
      %508 = vmatprep.subr.mxu0 0.0
      %509 = vmatpush1.msra.mxu0 0.0
      %510 = vmatprep.subr.mxu0 0.0
      %511 = vmatpush1.msra.mxu0 0.0
      %512 = vmatprep.subr.mxu0 0.0
      %513 = vmatpush1.msra.mxu0 0.0
      %514 = vmatprep.subr.mxu0 0.0
      %515 = vmatpush1.msra.mxu0 0.0
      %516 = vmatprep.subr.mxu0 0.0
      %517 = vmatpush1.msra.mxu0 0.0
      %518 = vmatprep.subr.mxu0 0.0
      %519 = vmatpush1.msra.mxu0 0.0
      %520 = vmatprep.subr.mxu0 0.0
      %521 = vmatpush1.msra.mxu0 0.0
      %522 = vmatprep.subr.mxu0 0.0
      %523 = vmatpush1.msra.mxu0 0.0
      %524 = vmatprep.subr.mxu0 0.0
      %525 = vmatpush1.msra.mxu0 0.0
      %526 = vmatprep.subr.mxu0 0.0
      %527 = vmatpush1.msra.mxu0 0.0
      %528 = vmatprep.subr.mxu0 0.0
      %529 = vmatpush1.msra.mxu0 0.0
      %530 = vmatprep.subr.mxu0 0.0
      %531 = vmatpush1.msra.mxu0 0.0
      %532 = vmatprep.subr.mxu0 0.0
      %533 = vmatpush1.msra.mxu0 0.0
      %534 = vmatprep.subr.mxu0 0.0
      %535 = vmatpush1.msra.mxu0 0.0
      %536 = vmatprep.subr.mxu0 0.0
      %537 = vmatpush1.msra.mxu0 0.0
      %538 = vmatprep.subr.mxu0 0.0
      %539 = vmatpush1.msra.mxu0 0.0
      %540 = vmatprep.subr.mxu0 0.0
      %541 = vmatpush1.msra.mxu0 0.0
      %542 = vmatprep.subr.mxu0 0.0
      %543 = vmatpush1.msra.mxu0 0.0
      %544 = vmatprep.subr.mxu0 0.0
      %545 = vmatpush1.msra.mxu0 0.0
      %546 = vmatprep.subr.mxu0 0.0
      %547 = vmatpush1.msra.mxu0 0.0
      %548 = vmatprep.mubr.f32.mxu0 0.0
      %549 = vmatmul.mubr.f32.gmra.mrb[0].mxu0 %v475
      %v550 = vpop.f32.mrb[0].mxu0
      %v551 = vadd.f32 %v462, %v550
      %v552 = vpop.f32.mrb[0].mxu0
      %v553 = vadd.f32 %v464, %v552
      %554 = vmatprep.mubr.f32.mxu0 0.0
      %555 = vmatmul.mubr.f32.gmra.mrb[0].mxu0 %v478
      %v556 = vpop.f32.mrb[0].mxu0
      %v557 = vadd.f32 %v468, %v556
      %v558 = vpop.f32.mrb[0].mxu0
      %v559 = vadd.f32 %v470, %v558
      %560 = vdwg.mxu0
      %v561 = vld [vmem:[%s5] sm:$0xff]
      %v562 = vld [vmem:[%s5 + $0x8] sm:$0xff]
      %564 = vset.pattern.permute.xlu0 0
      %565 = vperm.xlu0 %564, %v561
      %v566 = vpop.permute.xlu0 %565
      %569 = vset.pattern.permute.xlu0 0
      %570 = vperm.xlu0 %569, %v562
      %v571 = vpop.permute.xlu0 %570
      %v573 = vadd.f32 %v551, %v566
      %v574 = vadd.f32 %v553, %v566
      %v575 = vadd.f32 %v557, %v571
      %v576 = vadd.f32 %v559, %v571
      %577 = vst [vmem:[%s361] sm:$0xff] %v573
      %578 = vst [vmem:[%s361 + $0x8] sm:$0xff] %v574
      %579 = vst [vmem:[%s361 + $0x10] sm:$0xff] %v575
      %580 = vst [vmem:[%s361 + $0x18] sm:$0xff] %v576
      %s581 = smul.u32 2, %s22
      %p582 = scmp.lt.s32.totalorder %s21, 1
      %s583 = scalar_select %p582, %s21, 1
      %p584 = scmp.lt.s32.totalorder %s581, 1
      %s585 = scalar_select %p584, %s581, 1
      %s586 = smul.addr %s583, 4
      %s587 = sadd.s32 %s585, %s586
      %s588 = smul.addr %s587, 8
      %s589 = scalar_lea.vmem %s6, %s588
      // Predicated region
      $region45: #{light_bag_forward.3} parent=43 // pred_check
        %p590 = pneg %p196
      $region46: #{light_bag_forward.3} parent=43 // pred_check_branch
        %592 = sbr.rel (%p590) target = $region48
      $region47: #{light_bag_forward.3} parent=43 // pred_region
        %s593 = smul.u32 2, %s22
      $region48: #{light_bag_forward.3} parent=43 // pred_fallthru
        _
    $region44: #{light_bag_forward.3} parent=5 // pred_fallthru
      _
    %p594 = scmp.le.s32.totalorder 2, %s12
    // Predicated region
    $region49: #{light_bag_forward.3} parent=5 // pred_check
      %p595 = pneg %p594
    $region50: #{light_bag_forward.3} parent=5 // pred_check_branch
      %597 = sbr.rel (%p595) target = $region52
    $region51: #{light_bag_forward.3} parent=5 // pred_region
      %s598 = ssub.s32 %s12, 2
      // Predicated region
      $region53: #{light_bag_forward.3} parent=51 // pred_check
        %p599 = pneg %p202
      $region54: #{light_bag_forward.3} parent=51 // pred_check_branch
        %601 = sbr.rel (%p599) target = $region56
      $region55: #{light_bag_forward.3} parent=51 // pred_region
        %s602 = smul.u32 2, %s24
        %p603 = scmp.lt.s32.totalorder %s23, 1
        %s604 = scalar_select %p603, %s23, 1
        %p605 = scmp.lt.s32.totalorder %s602, 1
        %s606 = scalar_select %p605, %s602, 1
        %s607 = smul.addr %s604, 4
        %s608 = sadd.s32 %s606, %s607
        %s609 = smul.addr %s608, 8
        %s610 = scalar_lea.vmem %s6, %s609
      $region56: #{light_bag_forward.3} parent=51 // pred_fallthru
        _
    $region52: #{light_bag_forward.3} parent=5 // pred_fallthru
      _
  $region6: #{light_bag_forward.3} parent=0 // loop_footer
    %s16 = sadd.s32 1, %s12
  $region7: #{light_bag_forward.3} parent=0 // loop_footer_branch
    %11 = sbr.rel target = $region3
  $region8: #{light_bag_forward.3} parent=0 // loop_exit
    _

</llo_original>
